<compile_context>
chip_gen: v7x
topology: tpu7x:2x2x1
jax: 0.10.0
libtpu: 0.0.40
codegen_flags: <defaults>
</compile_context>

<pallas_src>
import functools

import jax
import jax.numpy as jnp
from jax import lax
from jax.experimental import pallas as pl
from jax.experimental.pallas import tpu as pltpu


# ----------------------------- Pallas kernels ------------------------------ #
def _lora_a_kernel(w_ref, p_ref, b_ref, o_ref):
    # w_ref: (1, K)   p_ref: (K, TMa)   b_ref: (1, 1)   o_ref: (1, TMa)  lane-dense.
    acc = jnp.dot(w_ref[...], p_ref[...], preferred_element_type=jnp.float32)
    o_ref[...] = (acc + b_ref[...]).astype(o_ref.dtype)


def _fused_conv_lora_kernel(x_ref, a9_ref, wf_ref, wb_ref, u_ref, b_ref, o_ref,
                            *, Wp, P):
    # One batch image per grid step; everything accumulates in f32.
    #   x_ref : (1, Cin, Pext)  flat zero-padded image, Pext = P + 2*Wp + 2
    #   a9_ref: (1, 9, Ma_img)  9-tap im2col of the padded lora_a map (tiny)
    #   wf_ref: (9, Cout, Cin)  fixed conv weight, tap-major            (resident)
    #   wb_ref: (Cout, 9)       lora_b conv weight                      (resident)
    #   u_ref : (Ma_img, P)     one-hot nearest-upsample matrix         (resident)
    #   b_ref : (Cout, 1)       b_fixed + b_b                           (resident)
    #   o_ref : (1, Cout, P)    lane-dense flattened padded output
    cout = wf_ref.shape[1]
    xv = x_ref[0]                                     # (Cin, Pext), lives in VMEM
    acc = jnp.zeros((cout, P), jnp.float32)

    # Fixed 3x3 conv: nine static lane-offset views of the flat padded image.
    # (in-kernel patch construction; replaces the old 9x im2col HBM stream)
    for t in range(9):
        kh, kw = divmod(t, 3)
        off = kh * Wp + kw                            # static offset into x_ext
        acc = acc + jnp.dot(wf_ref[t], xv[:, off:off + P],
                            preferred_element_type=jnp.float32)

    # lora_b on the small grid, then nearest-upsample + residual via one small dot
    # against the resident one-hot replication matrix U.
    lora_small = jnp.dot(wb_ref[...], a9_ref[0], preferred_element_type=jnp.float32)
    acc = acc + jnp.dot(lora_small, u_ref[...], preferred_element_type=jnp.float32)

    o_ref[...] = (acc + b_ref[...])[None].astype(o_ref.dtype)


# ------------------------------- glue helpers ------------------------------ #
def _im2col_T(x_nchw, k, stride, padding):
    """x: (N, Cin, H, W) -> patches_T (Cin*k*k, N*Hout*Wout).

    Only used for the *strided* lora_a conv, whose output grid is latent_factor^2
    smaller than the image, so this expansion is negligible."""
    N, C, H, W = x_nchw.shape
    xp = jnp.pad(x_nchw, ((0, 0), (0, 0), (padding, padding), (padding, padding)))
    Hout = (H + 2 * padding - k) // stride + 1
    Wout = (W + 2 * padding - k) // stride + 1
    cols = []
    for kh in range(k):
        for kw in range(k):
            cols.append(xp[:, :, kh:kh + stride * Hout:stride,
                           kw:kw + stride * Wout:stride])       # (N, C, Hout, Wout)
    p = jnp.stack(cols, axis=2)                                  # (N, C, 9, Hout, Wout)
    p = p.transpose(1, 2, 0, 3, 4)                               # (C, 9, N, Hout, Wout)
    return p.reshape(C * k * k, N * Hout * Wout), Hout, Wout


# ----------------------------- module forward ------------------------------ #
def lora_conv2d_forward(x, params, latent_factor=4):
    N, Cin, H, W = x.shape
    Cout = params["w_fixed"].shape[0]
    Hp, Wp = H + 2, W + 2
    P = Hp * Wp                       # flattened padded spatial extent (lane axis)
    Pext = P + 2 * Wp + 2             # + slack so every 3x3 tap is a static slice
    dtype = x.dtype

    # ---- lora_a: Conv2d(Cin, 1, k=3, s=latent_factor, p=1) — lane-dense matmul ----
    pa_T, Ha, Wa = _im2col_T(x, 3, latent_factor, 1)             # (Cin*9, Ma)
    K = Cin * 9
    Ma = pa_T.shape[1]
    TMa = Ma if Ma <= 2048 else 2048                             # full dim or 128-mult
    wa = params["w_a"].reshape(1, K)
    ba = params["b_a"].reshape(1, 1)
    a_flat = pl.pallas_call(
        _lora_a_kernel,
        out_shape=jax.ShapeDtypeStruct((1, Ma), jnp.float32),
        grid=(pl.cdiv(Ma, TMa),),
        in_specs=[pl.BlockSpec((1, K), lambda i: (0, 0)),
                  pl.BlockSpec((K, TMa), lambda i: (0, i)),
                  pl.BlockSpec((1, 1), lambda i: (0, 0))],
        out_specs=pl.BlockSpec((1, TMa), lambda i: (0, i)),
        compiler_params=pltpu.CompilerParams(dimension_semantics=("parallel",)),
    )(wa, pa_T, ba)
    a = a_flat.reshape(N, Ha, Wa)                                # lora_a feature map

    # ---- tiny 9-tap im2col of the lora_a map (9 * Ma floats ~= M/1.8, not 9*M) ----
    Ma_img = Ha * Wa
    a_pad = jnp.pad(a, ((0, 0), (1, 1), (1, 1)))
    taps = [a_pad[:, kh:kh + Ha, kw:kw + Wa] for kh in range(3) for kw in range(3)]
    a9s = jnp.stack(taps, axis=1).reshape(N, 9, Ma_img).astype(jnp.float32)

    # ---- flat padded + extended input so the kernel rebuilds patches in VMEM ----
    xp = jnp.pad(x, ((0, 0), (0, 0), (1, 1), (1, 1))).reshape(N, Cin, P)
    x_ext = jnp.pad(xp, ((0, 0), (0, 0), (Wp + 1, Wp + 1)))      # (N, Cin, Pext)

    # ---- one-hot nearest-upsample matrix U (Ha*Wa, P); torch 'nearest' indexing ----
    yy = jnp.arange(Hp) - 1
    xx = jnp.arange(Wp) - 1
    valid = ((yy >= 0) & (yy < H))[:, None] & ((xx >= 0) & (xx < W))[None, :]
    iy = jnp.clip((yy * Ha) // H, 0, Ha - 1)
    ix = jnp.clip((xx * Wa) // W, 0, Wa - 1)
    rid = jnp.where(valid, iy[:, None] * Wa + ix[None, :], -1).reshape(P)
    U = (rid[None, :] == jnp.arange(Ma_img)[:, None]).astype(jnp.float32)

    # ---- weights / bias in tap-major layouts (all tiny, VMEM-resident) ----
    wf9 = jnp.transpose(params["w_fixed"], (2, 3, 0, 1)).reshape(9, Cout, Cin)
    wb9 = params["w_b"].reshape(Cout, 9)
    bias = (params["b_fixed"] + params["b_b"]).reshape(Cout, 1)

    flops = int(N * (9 * 2 * Cout * Cin * P + 2 * Cout * 9 * Ma_img
                     + 2 * Cout * Ma_img * P))
    bytes_accessed = int(4 * (N * Cin * Pext + N * 9 * Ma_img + 9 * Cout * Cin
                              + Cout * 9 + Ma_img * P + Cout + N * Cout * P))

    kern = functools.partial(_fused_conv_lora_kernel, Wp=Wp, P=P)
    out_flat = pl.pallas_call(
        kern,
        out_shape=jax.ShapeDtypeStruct((N, Cout, P), dtype),
        grid=(N,),                                   # >=2 steps: both v7x TCs busy
        in_specs=[
            pl.BlockSpec((1, Cin, Pext), lambda n: (n, 0, 0)),   # per-image input
            pl.BlockSpec((1, 9, Ma_img), lambda n: (n, 0, 0)),   # per-image lora taps
            pl.BlockSpec((9, Cout, Cin), lambda n: (0, 0, 0)),   # resident
            pl.BlockSpec((Cout, 9), lambda n: (0, 0)),           # resident
            pl.BlockSpec((Ma_img, P), lambda n: (0, 0)),         # resident
            pl.BlockSpec((Cout, 1), lambda n: (0, 0)),           # resident
        ],
        out_specs=pl.BlockSpec((1, Cout, P), lambda n: (n, 0, 0)),
        compiler_params=pltpu.CompilerParams(dimension_semantics=("parallel",)),
        cost_estimate=pl.CostEstimate(flops=flops, transcendentals=0,
                                      bytes_accessed=bytes_accessed),
    )(x_ext, a9s, wf9, wb9, U, bias)

    # Already N, channel-major: just drop the padded border (no NCHW transpose).
    return out_flat.reshape(N, Cout, Hp, Wp)[:, :, 1:H + 1, 1:W + 1]


# --------------------------- pure-JAX reference ----------------------------- #
def _ref_conv(x, w, b, stride, padding):
    dn = lax.conv_dimension_numbers(x.shape, w.shape, ("NCHW", "OIHW", "NCHW"))
    y = lax.conv_general_dilated(
        x, w, (stride, stride), [(padding, padding), (padding, padding)],
        dimension_numbers=dn)
    return y + b[None, :, None, None]


def nearest_interpolate(x, size):
    # torch F.interpolate(mode='nearest'): src = floor(dst * src_size / dst_size)
    N, C, Hs, Ws = x.shape
    Hd, Wd = size
    h_idx = (jnp.arange(Hd) * Hs) // Hd
    w_idx = (jnp.arange(Wd) * Ws) // Wd
    return x[:, :, h_idx[:, None], w_idx[None, :]]


def ref_forward(x, p, latent_factor=4):
    fixed = _ref_conv(x, p["w_fixed"], p["b_fixed"], 1, 1)
    out = _ref_conv(x, p["w_a"], p["b_a"], latent_factor, 1)
    out = _ref_conv(out, p["w_b"], p["b_b"], 1, 1)
    out = nearest_interpolate(out, fixed.shape[-2:])
    return out + fixed


# ----------------------------------- main ----------------------------------- #
if __name__ == "__main__":
    in_channels, out_channels = 4, 8
    latent_factor = 4
    key = jax.random.PRNGKey(0)
    k1, k2, k3, k4, k5, k6, kx = jax.random.split(key, 7)

    # Module __init__ semantics: fixed_unit = default conv init (any deterministic
    # values), lora_a = randn_like (weight & bias), lora_b = zeros_like.
    params = {
        "w_fixed": 0.1 * jax.random.normal(k1, (out_channels, in_channels, 3, 3), jnp.float32),
        "b_fixed": 0.1 * jax.random.normal(k2, (out_channels,), jnp.float32),
        "w_a": jax.random.normal(k3, (1, in_channels, 3, 3), jnp.float32),
        "b_a": jax.random.normal(k4, (1,), jnp.float32),
        "w_b": jnp.zeros((out_channels, 1, 3, 3), jnp.float32),
        "b_b": jnp.zeros((out_channels,), jnp.float32),
    }

    x = jax.random.normal(kx, (2, in_channels, 16, 16), jnp.float32)  # NCHW

    fwd = jax.jit(functools.partial(lora_conv2d_forward, latent_factor=latent_factor))

    out = jax.block_until_ready(fwd(x, params))
    assert out.shape == (2, out_channels, 16, 16)
    ref = ref_forward(x, params, latent_factor)
    assert jnp.allclose(out, ref, atol=1e-4, rtol=1e-4)

    # Extra check with NONZERO lora_b weight/bias so the in-kernel
    # lora_b + nearest-upsample + residual path is numerically exercised.
    params_nz = dict(params)
    params_nz["w_b"] = 0.5 * jax.random.normal(k5, (out_channels, 1, 3, 3), jnp.float32)
    params_nz["b_b"] = 0.5 * jax.random.normal(k6, (out_channels,), jnp.float32)
    out_nz = jax.block_until_ready(fwd(x, params_nz))
    ref_nz = ref_forward(x, params_nz, latent_factor)
    assert jnp.allclose(out_nz, ref_nz, atol=1e-4, rtol=1e-4)

    print("KERNEL_OK")
</pallas_src>

<mosaic_0001>
module attributes {stable_mosaic.version = 11 : i64} {
  func.func @_lora_a_kernel(%arg0: i32, %arg1: memref<1x36xf32, #tpu.memory_space<vmem>>, %arg2: memref<36x32xf32, #tpu.memory_space<vmem>>, %arg3: memref<1x1xf32, #tpu.memory_space<vmem>>, %arg4: memref<1x32xf32, #tpu.memory_space<vmem>>) attributes {dimension_semantics = [#tpu.dimension_semantics<parallel>], iteration_bounds = array<i64: 1>, scalar_prefetch = 0 : i64, scratch_operands = 0 : i64, tpu.core_type = #tpu.core_type<tc>, window_params = [{pipeline_mode = #tpu.pipeline_mode<synchronous>, transform_indices = @transform_0, window_bounds = array<i64: 1, 36>}, {transform_indices = @transform_1, window_bounds = array<i64: 36, 32>}, {pipeline_mode = #tpu.pipeline_mode<synchronous>, transform_indices = @transform_2, window_bounds = array<i64: 1, 1>}, {transform_indices = @transform_3, window_bounds = array<i64: 1, 32>}]} {
    %c0 = arith.constant 0 : index
    %c0_0 = arith.constant 0 : index
    %0 = vector.load %arg1[%c0, %c0_0] : memref<1x36xf32, #tpu.memory_space<vmem>>, vector<1x36xf32>
    %c0_1 = arith.constant 0 : index
    %c0_2 = arith.constant 0 : index
    %1 = vector.load %arg2[%c0_1, %c0_2] : memref<36x32xf32, #tpu.memory_space<vmem>>, vector<36x32xf32>
    %cst = arith.constant dense<0.000000e+00> : vector<1x32xf32>
    %2 = tpu.matmul %0, %1, %cst {dimension_numbers = #tpu.dot_dimension_numbers<[1], [0], [0], [1], [0, 0, 1, 1], [], []>} : vector<1x36xf32>, vector<36x32xf32>, vector<1x32xf32> -> vector<1x32xf32>
    %c0_3 = arith.constant 0 : index
    %c0_4 = arith.constant 0 : index
    %3 = vector.load %arg3[%c0_3, %c0_4] : memref<1x1xf32, #tpu.memory_space<vmem>>, vector<1x1xf32>
    %4 = vector.broadcast %3 : vector<1x1xf32> to vector<1x32xf32>
    %5 = arith.addf %2, %4 : vector<1x32xf32>
    %c0_5 = arith.constant 0 : index
    %c0_6 = arith.constant 0 : index
    %6 = vector.load %arg4[%c0_5, %c0_6] : memref<1x32xf32, #tpu.memory_space<vmem>>, vector<1x32xf32>
    tpu.vector_store %arg4[%c0_5, %c0_6], %5 {strides = array<i32>} : memref<1x32xf32, #tpu.memory_space<vmem>>, vector<1x32xf32>,
    return
  }
  func.func @transform_0(%arg0: i32) -> (i32, i32) {
    %c0_i32 = arith.constant 0 : i32
    %c0_i32_0 = arith.constant 0 : i32
    %c0_i32_1 = arith.constant 0 : i32
    return %c0_i32, %c0_i32_0 : i32, i32
  }
  func.func @transform_1(%arg0: i32) -> (i32, i32) {
    %c0_i32 = arith.constant 0 : i32
    %c0_i32_0 = arith.constant 0 : i32
    return %c0_i32, %arg0 : i32, i32
  }
  func.func @transform_2(%arg0: i32) -> (i32, i32) {
    %c0_i32 = arith.constant 0 : i32
    %c0_i32_0 = arith.constant 0 : i32
    %c0_i32_1 = arith.constant 0 : i32
    return %c0_i32, %c0_i32_0 : i32, i32
  }
  func.func @transform_3(%arg0: i32) -> (i32, i32) {
    %c0_i32 = arith.constant 0 : i32
    %c0_i32_0 = arith.constant 0 : i32
    return %c0_i32, %arg0 : i32, i32
  }
}

module attributes {stable_mosaic.version = 11 : i64} {
  func.func @_fused_conv_lora_kernel(%arg0: i32, %arg1: memref<1x4x362xf32, #tpu.memory_space<vmem>>, %arg2: memref<1x9x16xf32, #tpu.memory_space<vmem>>, %arg3: memref<9x8x4xf32, #tpu.memory_space<vmem>>, %arg4: memref<8x9xf32, #tpu.memory_space<vmem>>, %arg5: memref<16x324xf32, #tpu.memory_space<vmem>>, %arg6: memref<8x1xf32, #tpu.memory_space<vmem>>, %arg7: memref<1x8x324xf32, #tpu.memory_space<vmem>>) attributes {dimension_semantics = [#tpu.dimension_semantics<parallel>], iteration_bounds = array<i64: 2>, scalar_prefetch = 0 : i64, scratch_operands = 0 : i64, tpu.core_type = #tpu.core_type<tc>, window_params = [{transform_indices = @transform_0, window_bounds = array<i64: 1, 4, 362>}, {transform_indices = @transform_1, window_bounds = array<i64: 1, 9, 16>}, {pipeline_mode = #tpu.pipeline_mode<synchronous>, transform_indices = @transform_2, window_bounds = array<i64: 9, 8, 4>}, {pipeline_mode = #tpu.pipeline_mode<synchronous>, transform_indices = @transform_3, window_bounds = array<i64: 8, 9>}, {pipeline_mode = #tpu.pipeline_mode<synchronous>, transform_indices = @transform_4, window_bounds = array<i64: 16, 324>}, {pipeline_mode = #tpu.pipeline_mode<synchronous>, transform_indices = @transform_5, window_bounds = array<i64: 8, 1>}, {transform_indices = @transform_6, window_bounds = array<i64: 1, 8, 324>}]} {
    %c0 = arith.constant 0 : index
    %c0_0 = arith.constant 0 : index
    %c0_1 = arith.constant 0 : index
    %0 = vector.load %arg1[%c0, %c0_0, %c0_1] : memref<1x4x362xf32, #tpu.memory_space<vmem>>, vector<1x4x362xf32>
    %1 = vector.shape_cast %0 : vector<1x4x362xf32> to vector<4x362xf32>
    %cst = arith.constant 0.000000e+00 : f32
    %2 = vector.broadcast %cst : f32 to vector<8x324xf32>
    %c0_2 = arith.constant 0 : index
    %c0_3 = arith.constant 0 : index
    %c0_4 = arith.constant 0 : index
    %3 = vector.load %arg3[%c0_2, %c0_3, %c0_4] : memref<9x8x4xf32, #tpu.memory_space<vmem>>, vector<1x8x4xf32>
    %4 = vector.shape_cast %3 : vector<1x8x4xf32> to vector<8x4xf32>
    %5 = vector.extract_strided_slice %1 {offsets = [0, 0], sizes = [4, 324], strides = [1, 1]} : vector<4x362xf32> to vector<4x324xf32>
    %cst_5 = arith.constant dense<0.000000e+00> : vector<8x324xf32>
    %6 = tpu.matmul %4, %5, %cst_5 {dimension_numbers = #tpu.dot_dimension_numbers<[1], [0], [0], [1], [0, 0, 1, 1], [], []>} : vector<8x4xf32>, vector<4x324xf32>, vector<8x324xf32> -> vector<8x324xf32>
    %7 = arith.addf %2, %6 : vector<8x324xf32>
    %c1 = arith.constant 1 : index
    %c0_6 = arith.constant 0 : index
    %c0_7 = arith.constant 0 : index
    %8 = vector.load %arg3[%c1, %c0_6, %c0_7] : memref<9x8x4xf32, #tpu.memory_space<vmem>>, vector<1x8x4xf32>
    %9 = vector.shape_cast %8 : vector<1x8x4xf32> to vector<8x4xf32>
    %10 = vector.extract_strided_slice %1 {offsets = [0, 1], sizes = [4, 324], strides = [1, 1]} : vector<4x362xf32> to vector<4x324xf32>
    %cst_8 = arith.constant dense<0.000000e+00> : vector<8x324xf32>
    %11 = tpu.matmul %9, %10, %cst_8 {dimension_numbers = #tpu.dot_dimension_numbers<[1], [0], [0], [1], [0, 0, 1, 1], [], []>} : vector<8x4xf32>, vector<4x324xf32>, vector<8x324xf32> -> vector<8x324xf32>
    %12 = arith.addf %7, %11 : vector<8x324xf32>
    %c2 = arith.constant 2 : index
    %c0_9 = arith.constant 0 : index
    %c0_10 = arith.constant 0 : index
    %13 = vector.load %arg3[%c2, %c0_9, %c0_10] : memref<9x8x4xf32, #tpu.memory_space<vmem>>, vector<1x8x4xf32>
    %14 = vector.shape_cast %13 : vector<1x8x4xf32> to vector<8x4xf32>
    %15 = vector.extract_strided_slice %1 {offsets = [0, 2], sizes = [4, 324], strides = [1, 1]} : vector<4x362xf32> to vector<4x324xf32>
    %cst_11 = arith.constant dense<0.000000e+00> : vector<8x324xf32>
    %16 = tpu.matmul %14, %15, %cst_11 {dimension_numbers = #tpu.dot_dimension_numbers<[1], [0], [0], [1], [0, 0, 1, 1], [], []>} : vector<8x4xf32>, vector<4x324xf32>, vector<8x324xf32> -> vector<8x324xf32>
    %17 = arith.addf %12, %16 : vector<8x324xf32>
    %c3 = arith.constant 3 : index
    %c0_12 = arith.constant 0 : index
    %c0_13 = arith.constant 0 : index
    %18 = vector.load %arg3[%c3, %c0_12, %c0_13] : memref<9x8x4xf32, #tpu.memory_space<vmem>>, vector<1x8x4xf32>
    %19 = vector.shape_cast %18 : vector<1x8x4xf32> to vector<8x4xf32>
    %20 = vector.extract_strided_slice %1 {offsets = [0, 18], sizes = [4, 324], strides = [1, 1]} : vector<4x362xf32> to vector<4x324xf32>
    %cst_14 = arith.constant dense<0.000000e+00> : vector<8x324xf32>
    %21 = tpu.matmul %19, %20, %cst_14 {dimension_numbers = #tpu.dot_dimension_numbers<[1], [0], [0], [1], [0, 0, 1, 1], [], []>} : vector<8x4xf32>, vector<4x324xf32>, vector<8x324xf32> -> vector<8x324xf32>
    %22 = arith.addf %17, %21 : vector<8x324xf32>
    %c4 = arith.constant 4 : index
    %c0_15 = arith.constant 0 : index
    %c0_16 = arith.constant 0 : index
    %23 = vector.load %arg3[%c4, %c0_15, %c0_16] : memref<9x8x4xf32, #tpu.memory_space<vmem>>, vector<1x8x4xf32>
    %24 = vector.shape_cast %23 : vector<1x8x4xf32> to vector<8x4xf32>
    %25 = vector.extract_strided_slice %1 {offsets = [0, 19], sizes = [4, 324], strides = [1, 1]} : vector<4x362xf32> to vector<4x324xf32>
    %cst_17 = arith.constant dense<0.000000e+00> : vector<8x324xf32>
    %26 = tpu.matmul %24, %25, %cst_17 {dimension_numbers = #tpu.dot_dimension_numbers<[1], [0], [0], [1], [0, 0, 1, 1], [], []>} : vector<8x4xf32>, vector<4x324xf32>, vector<8x324xf32> -> vector<8x324xf32>
    %27 = arith.addf %22, %26 : vector<8x324xf32>
    %c5 = arith.constant 5 : index
    %c0_18 = arith.constant 0 : index
    %c0_19 = arith.constant 0 : index
    %28 = vector.load %arg3[%c5, %c0_18, %c0_19] : memref<9x8x4xf32, #tpu.memory_space<vmem>>, vector<1x8x4xf32>
    %29 = vector.shape_cast %28 : vector<1x8x4xf32> to vector<8x4xf32>
    %30 = vector.extract_strided_slice %1 {offsets = [0, 20], sizes = [4, 324], strides = [1, 1]} : vector<4x362xf32> to vector<4x324xf32>
    %cst_20 = arith.constant dense<0.000000e+00> : vector<8x324xf32>
    %31 = tpu.matmul %29, %30, %cst_20 {dimension_numbers = #tpu.dot_dimension_numbers<[1], [0], [0], [1], [0, 0, 1, 1], [], []>} : vector<8x4xf32>, vector<4x324xf32>, vector<8x324xf32> -> vector<8x324xf32>
    %32 = arith.addf %27, %31 : vector<8x324xf32>
    %c6 = arith.constant 6 : index
    %c0_21 = arith.constant 0 : index
    %c0_22 = arith.constant 0 : index
    %33 = vector.load %arg3[%c6, %c0_21, %c0_22] : memref<9x8x4xf32, #tpu.memory_space<vmem>>, vector<1x8x4xf32>
    %34 = vector.shape_cast %33 : vector<1x8x4xf32> to vector<8x4xf32>
    %35 = vector.extract_strided_slice %1 {offsets = [0, 36], sizes = [4, 324], strides = [1, 1]} : vector<4x362xf32> to vector<4x324xf32>
    %cst_23 = arith.constant dense<0.000000e+00> : vector<8x324xf32>
    %36 = tpu.matmul %34, %35, %cst_23 {dimension_numbers = #tpu.dot_dimension_numbers<[1], [0], [0], [1], [0, 0, 1, 1], [], []>} : vector<8x4xf32>, vector<4x324xf32>, vector<8x324xf32> -> vector<8x324xf32>
    %37 = arith.addf %32, %36 : vector<8x324xf32>
    %c7 = arith.constant 7 : index
    %c0_24 = arith.constant 0 : index
    %c0_25 = arith.constant 0 : index
    %38 = vector.load %arg3[%c7, %c0_24, %c0_25] : memref<9x8x4xf32, #tpu.memory_space<vmem>>, vector<1x8x4xf32>
    %39 = vector.shape_cast %38 : vector<1x8x4xf32> to vector<8x4xf32>
    %40 = vector.extract_strided_slice %1 {offsets = [0, 37], sizes = [4, 324], strides = [1, 1]} : vector<4x362xf32> to vector<4x324xf32>
    %cst_26 = arith.constant dense<0.000000e+00> : vector<8x324xf32>
    %41 = tpu.matmul %39, %40, %cst_26 {dimension_numbers = #tpu.dot_dimension_numbers<[1], [0], [0], [1], [0, 0, 1, 1], [], []>} : vector<8x4xf32>, vector<4x324xf32>, vector<8x324xf32> -> vector<8x324xf32>
    %42 = arith.addf %37, %41 : vector<8x324xf32>
    %c8 = arith.constant 8 : index
    %c0_27 = arith.constant 0 : index
    %c0_28 = arith.constant 0 : index
    %43 = vector.load %arg3[%c8, %c0_27, %c0_28] : memref<9x8x4xf32, #tpu.memory_space<vmem>>, vector<1x8x4xf32>
    %44 = vector.shape_cast %43 : vector<1x8x4xf32> to vector<8x4xf32>
    %45 = vector.extract_strided_slice %1 {offsets = [0, 38], sizes = [4, 324], strides = [1, 1]} : vector<4x362xf32> to vector<4x324xf32>
    %cst_29 = arith.constant dense<0.000000e+00> : vector<8x324xf32>
    %46 = tpu.matmul %44, %45, %cst_29 {dimension_numbers = #tpu.dot_dimension_numbers<[1], [0], [0], [1], [0, 0, 1, 1], [], []>} : vector<8x4xf32>, vector<4x324xf32>, vector<8x324xf32> -> vector<8x324xf32>
    %47 = arith.addf %42, %46 : vector<8x324xf32>
    %c0_30 = arith.constant 0 : index
    %c0_31 = arith.constant 0 : index
    %48 = vector.load %arg4[%c0_30, %c0_31] : memref<8x9xf32, #tpu.memory_space<vmem>>, vector<8x9xf32>
    %c0_32 = arith.constant 0 : index
    %c0_33 = arith.constant 0 : index
    %c0_34 = arith.constant 0 : index
    %49 = vector.load %arg2[%c0_32, %c0_33, %c0_34] : memref<1x9x16xf32, #tpu.memory_space<vmem>>, vector<1x9x16xf32>
    %50 = vector.shape_cast %49 : vector<1x9x16xf32> to vector<9x16xf32>
    %cst_35 = arith.constant dense<0.000000e+00> : vector<8x16xf32>
    %51 = tpu.matmul %48, %50, %cst_35 {dimension_numbers = #tpu.dot_dimension_numbers<[1], [0], [0], [1], [0, 0, 1, 1], [], []>} : vector<8x9xf32>, vector<9x16xf32>, vector<8x16xf32> -> vector<8x16xf32>
    %c0_36 = arith.constant 0 : index
    %c0_37 = arith.constant 0 : index
    %52 = vector.load %arg5[%c0_36, %c0_37] : memref<16x324xf32, #tpu.memory_space<vmem>>, vector<16x324xf32>
    %cst_38 = arith.constant dense<0.000000e+00> : vector<8x324xf32>
    %53 = tpu.matmul %51, %52, %cst_38 {dimension_numbers = #tpu.dot_dimension_numbers<[1], [0], [0], [1], [0, 0, 1, 1], [], []>} : vector<8x16xf32>, vector<16x324xf32>, vector<8x324xf32> -> vector<8x324xf32>
    %54 = arith.addf %47, %53 : vector<8x324xf32>
    %c0_39 = arith.constant 0 : index
    %c0_40 = arith.constant 0 : index
    %55 = vector.load %arg6[%c0_39, %c0_40] : memref<8x1xf32, #tpu.memory_space<vmem>>, vector<8x1xf32>
    %56 = vector.broadcast %55 : vector<8x1xf32> to vector<8x324xf32>
    %57 = arith.addf %54, %56 : vector<8x324xf32>
    %58 = vector.shape_cast %57 : vector<8x324xf32> to vector<1x8x324xf32>
    %c0_41 = arith.constant 0 : index
    %c0_42 = arith.constant 0 : index
    %c0_43 = arith.constant 0 : index
    %59 = vector.load %arg7[%c0_41, %c0_42, %c0_43] : memref<1x8x324xf32, #tpu.memory_space<vmem>>, vector<1x8x324xf32>
    tpu.vector_store %arg7[%c0_41, %c0_42, %c0_43], %58 {strides = array<i32>} : memref<1x8x324xf32, #tpu.memory_space<vmem>>, vector<1x8x324xf32>,
    return
  }
  func.func @transform_0(%arg0: i32) -> (i32, i32, i32) {
    %c0_i32 = arith.constant 0 : i32
    %c0_i32_0 = arith.constant 0 : i32
    %c0_i32_1 = arith.constant 0 : i32
    return %arg0, %c0_i32, %c0_i32_0 : i32, i32, i32
  }
  func.func @transform_1(%arg0: i32) -> (i32, i32, i32) {
    %c0_i32 = arith.constant 0 : i32
    %c0_i32_0 = arith.constant 0 : i32
    %c0_i32_1 = arith.constant 0 : i32
    return %arg0, %c0_i32, %c0_i32_0 : i32, i32, i32
  }
  func.func @transform_2(%arg0: i32) -> (i32, i32, i32) {
    %c0_i32 = arith.constant 0 : i32
    %c0_i32_0 = arith.constant 0 : i32
    %c0_i32_1 = arith.constant 0 : i32
    %c0_i32_2 = arith.constant 0 : i32
    return %c0_i32, %c0_i32_0, %c0_i32_1 : i32, i32, i32
  }
  func.func @transform_3(%arg0: i32) -> (i32, i32) {
    %c0_i32 = arith.constant 0 : i32
    %c0_i32_0 = arith.constant 0 : i32
    %c0_i32_1 = arith.constant 0 : i32
    return %c0_i32, %c0_i32_0 : i32, i32
  }
  func.func @transform_4(%arg0: i32) -> (i32, i32) {
    %c0_i32 = arith.constant 0 : i32
    %c0_i32_0 = arith.constant 0 : i32
    %c0_i32_1 = arith.constant 0 : i32
    return %c0_i32, %c0_i32_0 : i32, i32
  }
  func.func @transform_5(%arg0: i32) -> (i32, i32) {
    %c0_i32 = arith.constant 0 : i32
    %c0_i32_0 = arith.constant 0 : i32
    %c0_i32_1 = arith.constant 0 : i32
    return %c0_i32, %c0_i32_0 : i32, i32
  }
  func.func @transform_6(%arg0: i32) -> (i32, i32, i32) {
    %c0_i32 = arith.constant 0 : i32
    %c0_i32_0 = arith.constant 0 : i32
    %c0_i32_1 = arith.constant 0 : i32
    return %arg0, %c0_i32, %c0_i32_0 : i32, i32, i32
  }
}

</mosaic_0001>

<llo_original>
// kernel: lora_conv2d_forward.2
$region0: #{lora_conv2d_forward.2}
  #allocation0 [shape = 'u32[]', space=smem, size = 0x4, offset = 0x4, fixed_abs, tag = 'smem constant byte address 0x4 - core index']
  #allocation1 [shape = 'u32[144,128]{1,0:T(1,128)}', space=vmem, size = 0x12000, scoped, tag = 'internal scratch']
  #allocation2 [shape = 'f32[1,1]{1,0:T(1,128)S(1)}', space=vmem, size = 0x200, scoped, tag = 'scoped memory for lora_conv2d_forward.2']
  %s0 = inlined_call_operand.vmem [shape: f32[1,36], index: 0, kind: input, shape index: {}]
  %s1 = inlined_call_operand.vmem [shape: f32[36,32], index: 1, kind: input, shape index: {}]
  %s2 = inlined_call_operand.<no memory space> [shape: f32[1,1], index: 2, kind: input, shape index: {}]
  %s3 = inlined_call_operand.vmem [shape: f32[1,32], index: 3, kind: output, shape index: {}]
  %s4 = sld [smem:[#allocation0]]
  $region22: #{lora_conv2d_forward.2} parent=0
    _
  %s6 = ssub.s32 1, %s4
  %s7 = scalar_select 0, %s6, %s4
  %v8 = vstv %s2
  %9 = vst [vmem:[#allocation2] sm:$0x1] %v8
  // Predicated region
  $region2: #{lora_conv2d_forward.2} parent=0 // pred_check
    _
  $region3: #{lora_conv2d_forward.2} parent=0 // pred_check_branch
    %11 = sbr.rel (0) target = $region5
  $region4: #{lora_conv2d_forward.2} parent=0 // pred_region
    _
  $region5: #{lora_conv2d_forward.2} parent=0 // pred_fallthru
    _
  // Predicated region
  $region6: #{lora_conv2d_forward.2} parent=0 // pred_check
    _
  $region7: #{lora_conv2d_forward.2} parent=0 // pred_check_branch
    %13 = sbr.rel (0) target = $region9
  $region8: #{lora_conv2d_forward.2} parent=0 // pred_region
    _
  $region9: #{lora_conv2d_forward.2} parent=0 // pred_fallthru
    _
  // Predicated region
  $region10: #{lora_conv2d_forward.2} parent=0 // pred_check
    _
  $region11: #{lora_conv2d_forward.2} parent=0 // pred_check_branch
    %15 = sbr.rel (0) target = $region13
  $region12: #{lora_conv2d_forward.2} parent=0 // pred_region
    _
  $region13: #{lora_conv2d_forward.2} parent=0 // pred_fallthru
    _
  %v16 = vld [vmem:[%s0] sm:$0x1]
  %v17 = vld [vmem:[%s1] sm:$0xff]
  %v18 = vld [vmem:[%s1 + $0x8] sm:$0xff]
  %v19 = vld [vmem:[%s1 + $0x10] sm:$0xff]
  %v20 = vld [vmem:[%s1 + $0x18] sm:$0xff]
  %v21 = vld [vmem:[%s1 + $0x20] sm:$0xf]
  %v22 = vld [vmem:[#allocation2] sm:$0x1]
  %24 = vset.pattern.permute.xlu0 0
  %25 = vperm.xlu0 %24, %v22
  %v26 = vpop.permute.xlu0 %25
  %v28 = vlaneseq
  %v29 = vshrl.u32 %v28, 7
  %v30 = vsub.s32 0, %v29
  %v31 = vrot.slane %v26, %v30
  %vm32 = vcmask 293888
  %v34 = vsel %vm32, %v16, 0
  %vm36 = vcmask 1043456
  %v38 = vsel %vm36, %v21, 0
  %40 = vmatprep.subr.mxu0 0.0
  %41 = vmatpush1.msra.mxu0 %v17
  %42 = vmatprep.subr.mxu0 0.0
  %43 = vmatpush1.msra.mxu0 %v18
  %44 = vmatprep.subr.mxu0 0.0
  %45 = vmatpush1.msra.mxu0 %v19
  %46 = vmatprep.subr.mxu0 0.0
  %47 = vmatpush1.msra.mxu0 %v20
  %48 = vmatprep.subr.mxu0 0.0
  %49 = vmatpush1.msra.mxu0 %v38
  %50 = vmatprep.subr.mxu0 0.0
  %51 = vmatpush1.msra.mxu0 0.0
  %52 = vmatprep.subr.mxu0 0.0
  %53 = vmatpush1.msra.mxu0 0.0
  %54 = vmatprep.subr.mxu0 0.0
  %55 = vmatpush1.msra.mxu0 0.0
  %56 = vmatprep.subr.mxu0 0.0
  %57 = vmatpush1.msra.mxu0 0.0
  %58 = vmatprep.subr.mxu0 0.0
  %59 = vmatpush1.msra.mxu0 0.0
  %60 = vmatprep.subr.mxu0 0.0
  %61 = vmatpush1.msra.mxu0 0.0
  %62 = vmatprep.subr.mxu0 0.0
  %63 = vmatpush1.msra.mxu0 0.0
  %64 = vmatprep.subr.mxu0 0.0
  %65 = vmatpush1.msra.mxu0 0.0
  %66 = vmatprep.subr.mxu0 0.0
  %67 = vmatpush1.msra.mxu0 0.0
  %68 = vmatprep.subr.mxu0 0.0
  %69 = vmatpush1.msra.mxu0 0.0
  %70 = vmatprep.subr.mxu0 0.0
  %71 = vmatpush1.msra.mxu0 0.0
  %72 = vmatprep.subr.mxu0 0.0
  %73 = vmatpush1.msra.mxu0 0.0
  %74 = vmatprep.subr.mxu0 0.0
  %75 = vmatpush1.msra.mxu0 0.0
  %76 = vmatprep.subr.mxu0 0.0
  %77 = vmatpush1.msra.mxu0 0.0
  %78 = vmatprep.subr.mxu0 0.0
  %79 = vmatpush1.msra.mxu0 0.0
  %80 = vmatprep.subr.mxu0 0.0
  %81 = vmatpush1.msra.mxu0 0.0
  %82 = vmatprep.subr.mxu0 0.0
  %83 = vmatpush1.msra.mxu0 0.0
  %84 = vmatprep.subr.mxu0 0.0
  %85 = vmatpush1.msra.mxu0 0.0
  %86 = vmatprep.subr.mxu0 0.0
  %87 = vmatpush1.msra.mxu0 0.0
  %88 = vmatprep.subr.mxu0 0.0
  %89 = vmatpush1.msra.mxu0 0.0
  %90 = vmatprep.subr.mxu0 0.0
  %91 = vmatpush1.msra.mxu0 0.0
  %92 = vmatprep.subr.mxu0 0.0
  %93 = vmatpush1.msra.mxu0 0.0
  %94 = vmatprep.subr.mxu0 0.0
  %95 = vmatpush1.msra.mxu0 0.0
  %96 = vmatprep.subr.mxu0 0.0
  %97 = vmatpush1.msra.mxu0 0.0
  %98 = vmatprep.subr.mxu0 0.0
  %99 = vmatpush1.msra.mxu0 0.0
  %100 = vmatprep.subr.mxu0 0.0
  %101 = vmatpush1.msra.mxu0 0.0
  %102 = vmatprep.subr.mxu0 0.0
  %103 = vmatpush1.msra.mxu0 0.0
  %104 = vmatprep.mubr.f32.mxu0 0.0
  %105 = vmatmul.mubr.f32.gmra.mrb[0].mxu0 %v34
  %v106 = vpop.f32.mrb[0].mxu0
  %v107 = vadd.f32 %v31, %v106
  %v108 = vpop.f32.mrb[0].mxu0
  %109 = vdwg.mxu0
  %vm110 = vcmask 253952
  %111 = vst.msk [vmem:[%s3] sm:$0x1] %vm110, %v107
  // Predicated region
  $region14: #{lora_conv2d_forward.2} parent=0 // pred_check
    _
  $region15: #{lora_conv2d_forward.2} parent=0 // pred_check_branch
    %113 = sbr.rel (0) target = $region17
  $region16: #{lora_conv2d_forward.2} parent=0 // pred_region
    _
  $region17: #{lora_conv2d_forward.2} parent=0 // pred_fallthru
    _
  // Predicated region
  $region18: #{lora_conv2d_forward.2} parent=0 // pred_check
    _
  $region19: #{lora_conv2d_forward.2} parent=0 // pred_check_branch
    %115 = sbr.rel (0) target = $region21
  $region20: #{lora_conv2d_forward.2} parent=0 // pred_region
    _
  $region21: #{lora_conv2d_forward.2} parent=0 // pred_fallthru
    _

// kernel: lora_conv2d_forward.3
$region0: #{lora_conv2d_forward.3}
  #allocation0 [shape = 'u32[]', space=smem, size = 0x4, offset = 0x4, fixed_abs, tag = 'smem constant byte address 0x4 - core index']
  #allocation1 [shape = 'u32[144,128]{1,0:T(1,128)}', space=vmem, size = 0x12000, scoped, tag = 'internal scratch']
  %s0 = inlined_call_operand.vmem [shape: f32[2,4,362], index: 0, kind: input, shape index: {}]
  %s1 = inlined_call_operand.vmem [shape: f32[2,9,16], index: 1, kind: input, shape index: {}]
  %s2 = inlined_call_operand.vmem [shape: f32[9,8,4], index: 2, kind: input, shape index: {}]
  %s3 = inlined_call_operand.vmem [shape: f32[8,9], index: 3, kind: input, shape index: {}]
  %s4 = inlined_call_operand.vmem [shape: f32[16,324], index: 4, kind: input, shape index: {}]
  %s5 = inlined_call_operand.vmem [shape: f32[8,1], index: 5, kind: input, shape index: {}]
  %s6 = inlined_call_operand.vmem [shape: f32[2,8,324], index: 6, kind: output, shape index: {}]
  %s7 = sld [smem:[#allocation0]]
  $region57: #{lora_conv2d_forward.3} parent=0
    _
  %s9 = ssub.s32 1, %s7
  %s10 = scalar_select 0, %s9, %s7
  loop: start=0, step=1, limit=4
  $region2: #{lora_conv2d_forward.3} parent=0 // loop_pre_header
    _
  $region3: #{lora_conv2d_forward.3} parent=0 // loop_header
    %s12 = sphi 0, %s16
    %p13 = scmp.ge.s32.totalorder %s12, 4
    %s22 = sphi 0, %s24
    %s25 = sphi 0, %s22
    %s26 = sphi 0, %s25
    %s42 = sphi 0, %s26
    %s48 = sphi 0, %s50
    %s51 = sphi 0, %s48
    %s52 = sphi 0, %s51
    %s68 = sphi 0, %s52
    %s72 = sphi 0, %s72
    %s74 = sphi 0, %s72
    %s75 = sphi 0, %s74
    %s89 = sphi 0, %s75
    %s93 = sphi 0, %s93
    %s95 = sphi 0, %s93
    %s96 = sphi 0, %s95
    %s110 = sphi 0, %s96
    %s114 = sphi 0, %s114
    %s116 = sphi 0, %s114
    %s117 = sphi 0, %s116
    %s131 = sphi 0, %s117
    %s135 = sphi 0, %s135
    %s137 = sphi 0, %s135
    %s138 = sphi 0, %s137
    %s152 = sphi 0, %s138
    %s158 = sphi 0, %s160
    %s161 = sphi 0, %s158
    %s162 = sphi 0, %s161
    %s178 = sphi 0, %s162
  $region4: #{lora_conv2d_forward.3} parent=0 // loop_header_branch
    %15 = sbr.rel (%p13) target = $region8
  $region5: #{lora_conv2d_forward.3} parent=0 // loop_body
    %s17 = ssub.s32 %s12, 1
    %s18 = ssub.s32 %s12, 2
    %s19 = sadd.s32 %s12, 1
    %s20 = ssub.s32 %s12, %s19
    %p21 = scmp.eq.s32.totalorder %s20, 0
    %s23 = sadd.s32 %s22, 1
    %s24 = scalar_select %p21, %s22, %s23
    %p27 = pneg %p21
    %p28 = scmp.eq.s32.totalorder %s12, 1
    %p29 = por %p27, %p28
    %p30 = scmp.ne.s32.totalorder %s22, %s25
    %p31 = scmp.eq.s32.totalorder %s12, 0
    %p32 = por %p30, %p31
    %p33 = scmp.ne.s32.totalorder %s22, %s25
    %p34 = scmp.eq.s32.totalorder %s17, 1
    %p35 = por %p33, %p34
    %p36 = scmp.ne.s32.totalorder %s25, %s26
    %p37 = scmp.eq.s32.totalorder %s17, 0
    %p38 = por %p36, %p37
    %p39 = scmp.ne.s32.totalorder %s25, %s26
    %p40 = scmp.eq.s32.totalorder %s18, 1
    %p41 = por %p39, %p40
    %p43 = scmp.ne.s32.totalorder %s26, %s42
    %p44 = scmp.eq.s32.totalorder %s18, 0
    %p45 = por %p43, %p44
    %s46 = ssub.s32 %s12, %s19
    %p47 = scmp.eq.s32.totalorder %s46, 0
    %s49 = sadd.s32 %s48, 1
    %s50 = scalar_select %p47, %s48, %s49
    %p53 = pneg %p47
    %p54 = scmp.eq.s32.totalorder %s12, 1
    %p55 = por %p53, %p54
    %p56 = scmp.ne.s32.totalorder %s48, %s51
    %p57 = scmp.eq.s32.totalorder %s12, 0
    %p58 = por %p56, %p57
    %p59 = scmp.ne.s32.totalorder %s48, %s51
    %p60 = scmp.eq.s32.totalorder %s17, 1
    %p61 = por %p59, %p60
    %p62 = scmp.ne.s32.totalorder %s51, %s52
    %p63 = scmp.eq.s32.totalorder %s17, 0
    %p64 = por %p62, %p63
    %p65 = scmp.ne.s32.totalorder %s51, %s52
    %p66 = scmp.eq.s32.totalorder %s18, 1
    %p67 = por %p65, %p66
    %p69 = scmp.ne.s32.totalorder %s52, %s68
    %p70 = scmp.eq.s32.totalorder %s18, 0
    %p71 = por %p69, %p70
    %s73 = sadd.s32 %s72, 1
    %p76 = scmp.eq.s32.totalorder %s12, 1
    %p77 = scmp.ne.s32.totalorder %s72, %s74
    %p78 = scmp.eq.s32.totalorder %s12, 0
    %p79 = por %p77, %p78
    %p80 = scmp.ne.s32.totalorder %s72, %s74
    %p81 = scmp.eq.s32.totalorder %s17, 1
    %p82 = por %p80, %p81
    %p83 = scmp.ne.s32.totalorder %s74, %s75
    %p84 = scmp.eq.s32.totalorder %s17, 0
    %p85 = por %p83, %p84
    %p86 = scmp.ne.s32.totalorder %s74, %s75
    %p87 = scmp.eq.s32.totalorder %s18, 1
    %p88 = por %p86, %p87
    %p90 = scmp.ne.s32.totalorder %s75, %s89
    %p91 = scmp.eq.s32.totalorder %s18, 0
    %p92 = por %p90, %p91
    %s94 = sadd.s32 %s93, 1
    %p97 = scmp.eq.s32.totalorder %s12, 1
    %p98 = scmp.ne.s32.totalorder %s93, %s95
    %p99 = scmp.eq.s32.totalorder %s12, 0
    %p100 = por %p98, %p99
    %p101 = scmp.ne.s32.totalorder %s93, %s95
    %p102 = scmp.eq.s32.totalorder %s17, 1
    %p103 = por %p101, %p102
    %p104 = scmp.ne.s32.totalorder %s95, %s96
    %p105 = scmp.eq.s32.totalorder %s17, 0
    %p106 = por %p104, %p105
    %p107 = scmp.ne.s32.totalorder %s95, %s96
    %p108 = scmp.eq.s32.totalorder %s18, 1
    %p109 = por %p107, %p108
    %p111 = scmp.ne.s32.totalorder %s96, %s110
    %p112 = scmp.eq.s32.totalorder %s18, 0
    %p113 = por %p111, %p112
    %s115 = sadd.s32 %s114, 1
    %p118 = scmp.eq.s32.totalorder %s12, 1
    %p119 = scmp.ne.s32.totalorder %s114, %s116
    %p120 = scmp.eq.s32.totalorder %s12, 0
    %p121 = por %p119, %p120
    %p122 = scmp.ne.s32.totalorder %s114, %s116
    %p123 = scmp.eq.s32.totalorder %s17, 1
    %p124 = por %p122, %p123
    %p125 = scmp.ne.s32.totalorder %s116, %s117
    %p126 = scmp.eq.s32.totalorder %s17, 0
    %p127 = por %p125, %p126
    %p128 = scmp.ne.s32.totalorder %s116, %s117
    %p129 = scmp.eq.s32.totalorder %s18, 1
    %p130 = por %p128, %p129
    %p132 = scmp.ne.s32.totalorder %s117, %s131
    %p133 = scmp.eq.s32.totalorder %s18, 0
    %p134 = por %p132, %p133
    %s136 = sadd.s32 %s135, 1
    %p139 = scmp.eq.s32.totalorder %s12, 1
    %p140 = scmp.ne.s32.totalorder %s135, %s137
    %p141 = scmp.eq.s32.totalorder %s12, 0
    %p142 = por %p140, %p141
    %p143 = scmp.ne.s32.totalorder %s135, %s137
    %p144 = scmp.eq.s32.totalorder %s17, 1
    %p145 = por %p143, %p144
    %p146 = scmp.ne.s32.totalorder %s137, %s138
    %p147 = scmp.eq.s32.totalorder %s17, 0
    %p148 = por %p146, %p147
    %p149 = scmp.ne.s32.totalorder %s137, %s138
    %p150 = scmp.eq.s32.totalorder %s18, 1
    %p151 = por %p149, %p150
    %p153 = scmp.ne.s32.totalorder %s138, %s152
    %p154 = scmp.eq.s32.totalorder %s18, 0
    %p155 = por %p153, %p154
    %s156 = ssub.s32 %s12, %s19
    %p157 = scmp.eq.s32.totalorder %s156, 0
    %s159 = sadd.s32 %s158, 1
    %s160 = scalar_select %p157, %s158, %s159
    %p163 = pneg %p157
    %p164 = scmp.eq.s32.totalorder %s12, 1
    %p165 = por %p163, %p164
    %p166 = scmp.ne.s32.totalorder %s158, %s161
    %p167 = scmp.eq.s32.totalorder %s12, 0
    %p168 = por %p166, %p167
    %p169 = scmp.ne.s32.totalorder %s158, %s161
    %p170 = scmp.eq.s32.totalorder %s17, 1
    %p171 = por %p169, %p170
    %p172 = scmp.ne.s32.totalorder %s161, %s162
    %p173 = scmp.eq.s32.totalorder %s17, 0
    %p174 = por %p172, %p173
    %p175 = scmp.ne.s32.totalorder %s161, %s162
    %p176 = scmp.eq.s32.totalorder %s18, 1
    %p177 = por %p175, %p176
    %p179 = scmp.ne.s32.totalorder %s162, %s178
    %p180 = scmp.eq.s32.totalorder %s18, 0
    %p181 = por %p179, %p180
    %p182 = scmp.le.s32.totalorder 1, %s12
    %p183 = scmp.lt.s32.totalorder %s12, 3
    %p184 = pnand %p182, %p183
    %p185 = pneg %p184
    // Predicated region
    $region9: #{lora_conv2d_forward.3} parent=5 // pred_check
      _
    $region10: #{lora_conv2d_forward.3} parent=5 // pred_check_branch
      %187 = sbr.rel (%p184) target = $region12
    $region11: #{lora_conv2d_forward.3} parent=5 // pred_region
      %s188 = ssub.s32 %s12, 1
      // Predicated region
      $region13: #{lora_conv2d_forward.3} parent=11 // pred_check
        %p189 = pneg %p85
      $region14: #{lora_conv2d_forward.3} parent=11 // pred_check_branch
        %191 = sbr.rel (%p189) target = $region16
      $region15: #{lora_conv2d_forward.3} parent=11 // pred_region
        _
      $region16: #{lora_conv2d_forward.3} parent=11 // pred_fallthru
        _
      // Predicated region
      $region17: #{lora_conv2d_forward.3} parent=11 // pred_check
        %p192 = pneg %p106
      $region18: #{lora_conv2d_forward.3} parent=11 // pred_check_branch
        %194 = sbr.rel (%p192) target = $region20
      $region19: #{lora_conv2d_forward.3} parent=11 // pred_region
        _
      $region20: #{lora_conv2d_forward.3} parent=11 // pred_fallthru
        _
      // Predicated region
      $region21: #{lora_conv2d_forward.3} parent=11 // pred_check
        %p195 = pneg %p127
      $region22: #{lora_conv2d_forward.3} parent=11 // pred_check_branch
        %197 = sbr.rel (%p195) target = $region24
      $region23: #{lora_conv2d_forward.3} parent=11 // pred_region
        _
      $region24: #{lora_conv2d_forward.3} parent=11 // pred_fallthru
        _
      // Predicated region
      $region25: #{lora_conv2d_forward.3} parent=11 // pred_check
        %p198 = pneg %p148
      $region26: #{lora_conv2d_forward.3} parent=11 // pred_check_branch
        %200 = sbr.rel (%p198) target = $region28
      $region27: #{lora_conv2d_forward.3} parent=11 // pred_region
        _
      $region28: #{lora_conv2d_forward.3} parent=11 // pred_fallthru
        _
    $region12: #{lora_conv2d_forward.3} parent=5 // pred_fallthru
      _
    %p201 = scmp.lt.s32.totalorder %s12, 2
    // Predicated region
    $region29: #{lora_conv2d_forward.3} parent=5 // pred_check
      %p202 = pneg %p201
    $region30: #{lora_conv2d_forward.3} parent=5 // pred_check_branch
      %204 = sbr.rel (%p202) target = $region32
    $region31: #{lora_conv2d_forward.3} parent=5 // pred_region
      // Predicated region
      $region33: #{lora_conv2d_forward.3} parent=31 // pred_check
        %p205 = pneg %p32
      $region34: #{lora_conv2d_forward.3} parent=31 // pred_check_branch
        %207 = sbr.rel (%p205) target = $region36
      $region35: #{lora_conv2d_forward.3} parent=31 // pred_region
        %p208 = scmp.lt.s32.totalorder %s12, 1
        %s209 = scalar_select %p208, %s12, 1
        %s210 = smul.addr %s209, 3
        %s211 = smul.addr %s210, 4
        %s212 = scalar_lea.vmem %s0, %s211
      $region36: #{lora_conv2d_forward.3} parent=31 // pred_fallthru
        _
      // Predicated region
      $region37: #{lora_conv2d_forward.3} parent=31 // pred_check
        %p213 = pneg %p58
      $region38: #{lora_conv2d_forward.3} parent=31 // pred_check_branch
        %215 = sbr.rel (%p213) target = $region40
      $region39: #{lora_conv2d_forward.3} parent=31 // pred_region
        %p216 = scmp.lt.s32.totalorder %s12, 1
        %s217 = scalar_select %p216, %s12, 1
        %s218 = smul.addr %s217, 2
        %s219 = smul.addr %s218, 8
        %s220 = scalar_lea.vmem %s1, %s219
      $region40: #{lora_conv2d_forward.3} parent=31 // pred_fallthru
        _
    $region32: #{lora_conv2d_forward.3} parent=5 // pred_fallthru
      _
    %p221 = scmp.le.s32.totalorder 1, %s12
    %p222 = scmp.lt.s32.totalorder %s12, 3
    %p223 = pnand %p221, %p222
    %p224 = pneg %p223
    // Predicated region
    $region41: #{lora_conv2d_forward.3} parent=5 // pred_check
      _
    $region42: #{lora_conv2d_forward.3} parent=5 // pred_check_branch
      %226 = sbr.rel (%p223) target = $region44
    $region43: #{lora_conv2d_forward.3} parent=5 // pred_region
      %s227 = ssub.s32 %s12, 1
      %p228 = scmp.lt.s32.totalorder %s17, 1
      %s229 = scalar_select %p228, %s17, 1
      %s230 = smul.addr %s229, 3
      %s231 = smul.addr %s230, 4
      %s232 = scalar_lea.vmem %s0, %s231
      %p233 = pneg %p38
      %p234 = pneg %p35
      %p235 = scmp.lt.s32.totalorder %s17, 1
      %s236 = scalar_select %p235, %s17, 1
      %s237 = smul.addr %s236, 2
      %s238 = smul.addr %s237, 8
      %s239 = scalar_lea.vmem %s1, %s238
      %p240 = pneg %p64
      %p241 = pneg %p61
      %p242 = pneg %p85
      %p243 = pneg %p82
      %p244 = pneg %p106
      %p245 = pneg %p103
      %p246 = pneg %p127
      %p247 = pneg %p124
      %p248 = pneg %p148
      %p249 = pneg %p145
      %p250 = pneg %p174
      %p251 = pneg %p171
      %p252 = scmp.lt.s32.totalorder %s17, 1
      %s253 = scalar_select %p252, %s17, 1
      %s254 = smul.addr %s253, 3
      %s255 = smul.addr %s254, 8
      %s256 = scalar_lea.vmem %s6, %s255
      %p257 = scmp.lt.s32.totalorder %s17, 1
      %s258 = scalar_select %p257, %s17, 1
      %s259 = smul.addr %s258, 3
      %s260 = smul.addr %s259, 4
      %s261 = scalar_lea.vmem %s0, %s260
      %p262 = scmp.lt.s32.totalorder %s17, 1
      %s263 = scalar_select %p262, %s17, 1
      %s264 = smul.addr %s263, 2
      %s265 = smul.addr %s264, 8
      %s266 = scalar_lea.vmem %s1, %s265
      %p267 = scmp.lt.s32.totalorder %s17, 1
      %s268 = scalar_select %p267, %s17, 1
      %s269 = smul.addr %s268, 3
      %s270 = smul.addr %s269, 8
      %s271 = scalar_lea.vmem %s6, %s270
      %v272 = vld [vmem:[%s261] sm:$0xff]
      %v273 = vld [vmem:[%s261 + $0x8] sm:$0xf]
      %v274 = vld [vmem:[%s2] sm:$0xff]
      %s275 = scalar_lea.vmem %s2, 8
      %v276 = vld [vmem:[%s275] sm:$0xff]
      %v279 = vcombine.high %v272, %v272
      %280 = vrot.lane.b32.xlu0 %v272, 127
      %v281 = vpop.permute.xlu0 %280
      %282 = vrot.lane.b32.xlu0 %v279, 127
      %v283 = vpop.permute.xlu0 %282
      %284 = vrot.lane.b32.xlu0 %v273, 127
      %v285 = vpop.permute.xlu0 %284
      %vm286 = vcmask 1039360
      %v287 = vsel %vm286, %v281, %v283
      %v288 = vsel %vm286, %v283, %v285
      %vm289 = vcmask 31744
      %v291 = vsel %vm289, %v276, 0
      %vm293 = vcmask 1043456
      %v294 = vsel %vm293, %v287, 0
      %v296 = vsel %vm293, %v288, 0
      %v298 = vsel %vm293, %v285, 0
      %300 = vmatprep.subr.mxu0 %v296
      %301 = vmatpush1.msra.mxu0 %v294
      %302 = vmatprep.subr.mxu0 0.0
      %303 = vmatpush1.msra.mxu0 0.0
      %304 = vmatprep.subr.mxu0 0.0
      %305 = vmatpush1.msra.mxu0 0.0
      %306 = vmatprep.subr.mxu0 0.0
      %307 = vmatpush1.msra.mxu0 0.0
      %308 = vmatprep.subr.mxu0 0.0
      %309 = vmatpush1.msra.mxu0 0.0
      %310 = vmatprep.subr.mxu0 0.0
      %311 = vmatpush1.msra.mxu0 0.0
      %312 = vmatprep.subr.mxu0 0.0
      %313 = vmatpush1.msra.mxu0 0.0
      %314 = vmatprep.subr.mxu0 0.0
      %315 = vmatpush1.msra.mxu0 0.0
      %316 = vmatprep.subr.mxu0 0.0
      %317 = vmatpush1.msra.mxu0 0.0
      %318 = vmatprep.subr.mxu0 0.0
      %319 = vmatpush1.msra.mxu0 0.0
      %320 = vmatprep.subr.mxu0 0.0
      %321 = vmatpush1.msra.mxu0 0.0
      %322 = vmatprep.subr.mxu0 0.0
      %323 = vmatpush1.msra.mxu0 0.0
      %324 = vmatprep.subr.mxu0 0.0
      %325 = vmatpush1.msra.mxu0 0.0
      %326 = vmatprep.subr.mxu0 0.0
      %327 = vmatpush1.msra.mxu0 0.0
      %328 = vmatprep.subr.mxu0 0.0
      %329 = vmatpush1.msra.mxu0 0.0
      %330 = vmatprep.subr.mxu0 0.0
      %331 = vmatpush1.msra.mxu0 0.0
      %332 = vmatprep.subr.mxu0 0.0
      %333 = vmatpush1.msra.mxu0 0.0
      %334 = vmatprep.subr.mxu0 0.0
      %335 = vmatpush1.msra.mxu0 0.0
      %336 = vmatprep.subr.mxu0 0.0
      %337 = vmatpush1.msra.mxu0 0.0
      %338 = vmatprep.subr.mxu0 0.0
      %339 = vmatpush1.msra.mxu0 0.0
      %340 = vmatprep.subr.mxu0 0.0
      %341 = vmatpush1.msra.mxu0 0.0
      %342 = vmatprep.subr.mxu0 0.0
      %343 = vmatpush1.msra.mxu0 0.0
      %344 = vmatprep.subr.mxu0 0.0
      %345 = vmatpush1.msra.mxu0 0.0
      %346 = vmatprep.subr.mxu0 0.0
      %347 = vmatpush1.msra.mxu0 0.0
      %348 = vmatprep.subr.mxu0 0.0
      %349 = vmatpush1.msra.mxu0 0.0
      %350 = vmatprep.subr.mxu0 0.0
      %351 = vmatpush1.msra.mxu0 0.0
      %352 = vmatprep.subr.mxu0 0.0
      %353 = vmatpush1.msra.mxu0 0.0
      %354 = vmatprep.subr.mxu0 0.0
      %355 = vmatpush1.msra.mxu0 0.0
      %356 = vmatprep.subr.mxu0 0.0
      %357 = vmatpush1.msra.mxu0 0.0
      %358 = vmatprep.subr.mxu0 0.0
      %359 = vmatpush1.msra.mxu0 0.0
      %360 = vmatprep.subr.mxu0 0.0
      %361 = vmatpush1.msra.mxu0 0.0
      %362 = vmatprep.subr.mxu0 0.0
      %363 = vmatpush1.msra.mxu0 0.0
      %364 = vmatprep.mubr.f32.mxu0 0.0
      %365 = vmatmul.mubr.f32.gmra.mrb[0].mxu0 %v291
      %v366 = vpop.f32.mrb[0].mxu0
      %v367 = vadd.f32 0.0, %v366
      %v368 = vpop.f32.mrb[0].mxu0
      %v369 = vadd.f32 0.0, %v368
      %370 = vdwg.mxu0
      %371 = vmatprep.subr.mxu0 0.0
      %372 = vmatpush1.msra.mxu0 %v298
      %373 = vmatprep.subr.mxu0 0.0
      %374 = vmatpush1.msra.mxu0 0.0
      %375 = vmatprep.subr.mxu0 0.0
      %376 = vmatpush1.msra.mxu0 0.0
      %377 = vmatprep.subr.mxu0 0.0
      %378 = vmatpush1.msra.mxu0 0.0
      %379 = vmatprep.subr.mxu0 0.0
      %380 = vmatpush1.msra.mxu0 0.0
      %381 = vmatprep.subr.mxu0 0.0
      %382 = vmatpush1.msra.mxu0 0.0
      %383 = vmatprep.subr.mxu0 0.0
      %384 = vmatpush1.msra.mxu0 0.0
      %385 = vmatprep.subr.mxu0 0.0
      %386 = vmatpush1.msra.mxu0 0.0
      %387 = vmatprep.subr.mxu0 0.0
      %388 = vmatpush1.msra.mxu0 0.0
      %389 = vmatprep.subr.mxu0 0.0
      %390 = vmatpush1.msra.mxu0 0.0
      %391 = vmatprep.subr.mxu0 0.0
      %392 = vmatpush1.msra.mxu0 0.0
      %393 = vmatprep.subr.mxu0 0.0
      %394 = vmatpush1.msra.mxu0 0.0
      %395 = vmatprep.subr.mxu0 0.0
      %396 = vmatpush1.msra.mxu0 0.0
      %397 = vmatprep.subr.mxu0 0.0
      %398 = vmatpush1.msra.mxu0 0.0
      %399 = vmatprep.subr.mxu0 0.0
      %400 = vmatpush1.msra.mxu0 0.0
      %401 = vmatprep.subr.mxu0 0.0
      %402 = vmatpush1.msra.mxu0 0.0
      %403 = vmatprep.subr.mxu0 0.0
      %404 = vmatpush1.msra.mxu0 0.0
      %405 = vmatprep.subr.mxu0 0.0
      %406 = vmatpush1.msra.mxu0 0.0
      %407 = vmatprep.subr.mxu0 0.0
      %408 = vmatpush1.msra.mxu0 0.0
      %409 = vmatprep.subr.mxu0 0.0
      %410 = vmatpush1.msra.mxu0 0.0
      %411 = vmatprep.subr.mxu0 0.0
      %412 = vmatpush1.msra.mxu0 0.0
      %413 = vmatprep.subr.mxu0 0.0
      %414 = vmatpush1.msra.mxu0 0.0
      %415 = vmatprep.subr.mxu0 0.0
      %416 = vmatpush1.msra.mxu0 0.0
      %417 = vmatprep.subr.mxu0 0.0
      %418 = vmatpush1.msra.mxu0 0.0
      %419 = vmatprep.subr.mxu0 0.0
      %420 = vmatpush1.msra.mxu0 0.0
      %421 = vmatprep.subr.mxu0 0.0
      %422 = vmatpush1.msra.mxu0 0.0
      %423 = vmatprep.subr.mxu0 0.0
      %424 = vmatpush1.msra.mxu0 0.0
      %425 = vmatprep.subr.mxu0 0.0
      %426 = vmatpush1.msra.mxu0 0.0
      %427 = vmatprep.subr.mxu0 0.0
      %428 = vmatpush1.msra.mxu0 0.0
      %429 = vmatprep.subr.mxu0 0.0
      %430 = vmatpush1.msra.mxu0 0.0
      %431 = vmatprep.subr.mxu0 0.0
      %432 = vmatpush1.msra.mxu0 0.0
      %433 = vmatprep.subr.mxu0 0.0
      %434 = vmatpush1.msra.mxu0 0.0
      %435 = vmatprep.mubr.f32.mxu0 0.0
      %436 = vmatmul.mubr.f32.gmra.mrb[0].mxu0 %v291
      %v437 = vpop.f32.mrb[0].mxu0
      %v438 = vadd.f32 0.0, %v437
      %v439 = vpop.f32.mrb[0].mxu0
      %440 = vdwg.mxu0
      %v442 = vsel %vm289, %v274, 0
      %v444 = vsel %vm293, %v272, 0
      %v446 = vsel %vm293, %v279, 0
      %v448 = vsel %vm293, %v273, 0
      %450 = vmatprep.subr.mxu0 %v446
      %451 = vmatpush1.msra.mxu0 %v444
      %452 = vmatprep.subr.mxu0 0.0
      %453 = vmatpush1.msra.mxu0 0.0
      %454 = vmatprep.subr.mxu0 0.0
      %455 = vmatpush1.msra.mxu0 0.0
      %456 = vmatprep.subr.mxu0 0.0
      %457 = vmatpush1.msra.mxu0 0.0
      %458 = vmatprep.subr.mxu0 0.0
      %459 = vmatpush1.msra.mxu0 0.0
      %460 = vmatprep.subr.mxu0 0.0
      %461 = vmatpush1.msra.mxu0 0.0
      %462 = vmatprep.subr.mxu0 0.0
      %463 = vmatpush1.msra.mxu0 0.0
      %464 = vmatprep.subr.mxu0 0.0
      %465 = vmatpush1.msra.mxu0 0.0
      %466 = vmatprep.subr.mxu0 0.0
      %467 = vmatpush1.msra.mxu0 0.0
      %468 = vmatprep.subr.mxu0 0.0
      %469 = vmatpush1.msra.mxu0 0.0
      %470 = vmatprep.subr.mxu0 0.0
      %471 = vmatpush1.msra.mxu0 0.0
      %472 = vmatprep.subr.mxu0 0.0
      %473 = vmatpush1.msra.mxu0 0.0
      %474 = vmatprep.subr.mxu0 0.0
      %475 = vmatpush1.msra.mxu0 0.0
      %476 = vmatprep.subr.mxu0 0.0
      %477 = vmatpush1.msra.mxu0 0.0
      %478 = vmatprep.subr.mxu0 0.0
      %479 = vmatpush1.msra.mxu0 0.0
      %480 = vmatprep.subr.mxu0 0.0
      %481 = vmatpush1.msra.mxu0 0.0
      %482 = vmatprep.subr.mxu0 0.0
      %483 = vmatpush1.msra.mxu0 0.0
      %484 = vmatprep.subr.mxu0 0.0
      %485 = vmatpush1.msra.mxu0 0.0
      %486 = vmatprep.subr.mxu0 0.0
      %487 = vmatpush1.msra.mxu0 0.0
      %488 = vmatprep.subr.mxu0 0.0
      %489 = vmatpush1.msra.mxu0 0.0
      %490 = vmatprep.subr.mxu0 0.0
      %491 = vmatpush1.msra.mxu0 0.0
      %492 = vmatprep.subr.mxu0 0.0
      %493 = vmatpush1.msra.mxu0 0.0
      %494 = vmatprep.subr.mxu0 0.0
      %495 = vmatpush1.msra.mxu0 0.0
      %496 = vmatprep.subr.mxu0 0.0
      %497 = vmatpush1.msra.mxu0 0.0
      %498 = vmatprep.subr.mxu0 0.0
      %499 = vmatpush1.msra.mxu0 0.0
      %500 = vmatprep.subr.mxu0 0.0
      %501 = vmatpush1.msra.mxu0 0.0
      %502 = vmatprep.subr.mxu0 0.0
      %503 = vmatpush1.msra.mxu0 0.0
      %504 = vmatprep.subr.mxu0 0.0
      %505 = vmatpush1.msra.mxu0 0.0
      %506 = vmatprep.subr.mxu0 0.0
      %507 = vmatpush1.msra.mxu0 0.0
      %508 = vmatprep.subr.mxu0 0.0
      %509 = vmatpush1.msra.mxu0 0.0
      %510 = vmatprep.subr.mxu0 0.0
      %511 = vmatpush1.msra.mxu0 0.0
      %512 = vmatprep.subr.mxu0 0.0
      %513 = vmatpush1.msra.mxu0 0.0
      %514 = vmatprep.mubr.f32.mxu0 0.0
      %515 = vmatmul.mubr.f32.gmra.mrb[0].mxu0 %v442
      %v516 = vpop.f32.mrb[0].mxu0
      %v517 = vadd.f32 %v367, %v516
      %v518 = vpop.f32.mrb[0].mxu0
      %v519 = vadd.f32 %v369, %v518
      %520 = vdwg.mxu0
      %521 = vmatprep.subr.mxu0 0.0
      %522 = vmatpush1.msra.mxu0 %v448
      %523 = vmatprep.subr.mxu0 0.0
      %524 = vmatpush1.msra.mxu0 0.0
      %525 = vmatprep.subr.mxu0 0.0
      %526 = vmatpush1.msra.mxu0 0.0
      %527 = vmatprep.subr.mxu0 0.0
      %528 = vmatpush1.msra.mxu0 0.0
      %529 = vmatprep.subr.mxu0 0.0
      %530 = vmatpush1.msra.mxu0 0.0
      %531 = vmatprep.subr.mxu0 0.0
      %532 = vmatpush1.msra.mxu0 0.0
      %533 = vmatprep.subr.mxu0 0.0
      %534 = vmatpush1.msra.mxu0 0.0
      %535 = vmatprep.subr.mxu0 0.0
      %536 = vmatpush1.msra.mxu0 0.0
      %537 = vmatprep.subr.mxu0 0.0
      %538 = vmatpush1.msra.mxu0 0.0
      %539 = vmatprep.subr.mxu0 0.0
      %540 = vmatpush1.msra.mxu0 0.0
      %541 = vmatprep.subr.mxu0 0.0
      %542 = vmatpush1.msra.mxu0 0.0
      %543 = vmatprep.subr.mxu0 0.0
      %544 = vmatpush1.msra.mxu0 0.0
      %545 = vmatprep.subr.mxu0 0.0
      %546 = vmatpush1.msra.mxu0 0.0
      %547 = vmatprep.subr.mxu0 0.0
      %548 = vmatpush1.msra.mxu0 0.0
      %549 = vmatprep.subr.mxu0 0.0
      %550 = vmatpush1.msra.mxu0 0.0
      %551 = vmatprep.subr.mxu0 0.0
      %552 = vmatpush1.msra.mxu0 0.0
      %553 = vmatprep.subr.mxu0 0.0
      %554 = vmatpush1.msra.mxu0 0.0
      %555 = vmatprep.subr.mxu0 0.0
      %556 = vmatpush1.msra.mxu0 0.0
      %557 = vmatprep.subr.mxu0 0.0
      %558 = vmatpush1.msra.mxu0 0.0
      %559 = vmatprep.subr.mxu0 0.0
      %560 = vmatpush1.msra.mxu0 0.0
      %561 = vmatprep.subr.mxu0 0.0
      %562 = vmatpush1.msra.mxu0 0.0
      %563 = vmatprep.subr.mxu0 0.0
      %564 = vmatpush1.msra.mxu0 0.0
      %565 = vmatprep.subr.mxu0 0.0
      %566 = vmatpush1.msra.mxu0 0.0
      %567 = vmatprep.subr.mxu0 0.0
      %568 = vmatpush1.msra.mxu0 0.0
      %569 = vmatprep.subr.mxu0 0.0
      %570 = vmatpush1.msra.mxu0 0.0
      %571 = vmatprep.subr.mxu0 0.0
      %572 = vmatpush1.msra.mxu0 0.0
      %573 = vmatprep.subr.mxu0 0.0
      %574 = vmatpush1.msra.mxu0 0.0
      %575 = vmatprep.subr.mxu0 0.0
      %576 = vmatpush1.msra.mxu0 0.0
      %577 = vmatprep.subr.mxu0 0.0
      %578 = vmatpush1.msra.mxu0 0.0
      %579 = vmatprep.subr.mxu0 0.0
      %580 = vmatpush1.msra.mxu0 0.0
      %581 = vmatprep.subr.mxu0 0.0
      %582 = vmatpush1.msra.mxu0 0.0
      %583 = vmatprep.subr.mxu0 0.0
      %584 = vmatpush1.msra.mxu0 0.0
      %585 = vmatprep.mubr.f32.mxu0 0.0
      %586 = vmatmul.mubr.f32.gmra.mrb[0].mxu0 %v442
      %v587 = vpop.f32.mrb[0].mxu0
      %v588 = vadd.f32 %v438, %v587
      %v589 = vpop.f32.mrb[0].mxu0
      %590 = vdwg.mxu0
      %s591 = scalar_lea.vmem %s2, 16
      %v592 = vld [vmem:[%s591] sm:$0xff]
      %593 = vrot.lane.b32.xlu0 %v272, 126
      %v594 = vpop.permute.xlu0 %593
      %595 = vrot.lane.b32.xlu0 %v279, 126
      %v596 = vpop.permute.xlu0 %595
      %597 = vrot.lane.b32.xlu0 %v273, 126
      %v598 = vpop.permute.xlu0 %597
      %vm599 = vcmask 1031168
      %v600 = vsel %vm599, %v594, %v596
      %v601 = vsel %vm599, %v596, %v598
      %v603 = vsel %vm289, %v592, 0
      %v605 = vsel %vm293, %v600, 0
      %v607 = vsel %vm293, %v601, 0
      %v609 = vsel %vm293, %v598, 0
      %611 = vmatprep.subr.mxu0 %v607
      %612 = vmatpush1.msra.mxu0 %v605
      %613 = vmatprep.subr.mxu0 0.0
      %614 = vmatpush1.msra.mxu0 0.0
      %615 = vmatprep.subr.mxu0 0.0
      %616 = vmatpush1.msra.mxu0 0.0
      %617 = vmatprep.subr.mxu0 0.0
      %618 = vmatpush1.msra.mxu0 0.0
      %619 = vmatprep.subr.mxu0 0.0
      %620 = vmatpush1.msra.mxu0 0.0
      %621 = vmatprep.subr.mxu0 0.0
      %622 = vmatpush1.msra.mxu0 0.0
      %623 = vmatprep.subr.mxu0 0.0
      %624 = vmatpush1.msra.mxu0 0.0
      %625 = vmatprep.subr.mxu0 0.0
      %626 = vmatpush1.msra.mxu0 0.0
      %627 = vmatprep.subr.mxu0 0.0
      %628 = vmatpush1.msra.mxu0 0.0
      %629 = vmatprep.subr.mxu0 0.0
      %630 = vmatpush1.msra.mxu0 0.0
      %631 = vmatprep.subr.mxu0 0.0
      %632 = vmatpush1.msra.mxu0 0.0
      %633 = vmatprep.subr.mxu0 0.0
      %634 = vmatpush1.msra.mxu0 0.0
      %635 = vmatprep.subr.mxu0 0.0
      %636 = vmatpush1.msra.mxu0 0.0
      %637 = vmatprep.subr.mxu0 0.0
      %638 = vmatpush1.msra.mxu0 0.0
      %639 = vmatprep.subr.mxu0 0.0
      %640 = vmatpush1.msra.mxu0 0.0
      %641 = vmatprep.subr.mxu0 0.0
      %642 = vmatpush1.msra.mxu0 0.0
      %643 = vmatprep.subr.mxu0 0.0
      %644 = vmatpush1.msra.mxu0 0.0
      %645 = vmatprep.subr.mxu0 0.0
      %646 = vmatpush1.msra.mxu0 0.0
      %647 = vmatprep.subr.mxu0 0.0
      %648 = vmatpush1.msra.mxu0 0.0
      %649 = vmatprep.subr.mxu0 0.0
      %650 = vmatpush1.msra.mxu0 0.0
      %651 = vmatprep.subr.mxu0 0.0
      %652 = vmatpush1.msra.mxu0 0.0
      %653 = vmatprep.subr.mxu0 0.0
      %654 = vmatpush1.msra.mxu0 0.0
      %655 = vmatprep.subr.mxu0 0.0
      %656 = vmatpush1.msra.mxu0 0.0
      %657 = vmatprep.subr.mxu0 0.0
      %658 = vmatpush1.msra.mxu0 0.0
      %659 = vmatprep.subr.mxu0 0.0
      %660 = vmatpush1.msra.mxu0 0.0
      %661 = vmatprep.subr.mxu0 0.0
      %662 = vmatpush1.msra.mxu0 0.0
      %663 = vmatprep.subr.mxu0 0.0
      %664 = vmatpush1.msra.mxu0 0.0
      %665 = vmatprep.subr.mxu0 0.0
      %666 = vmatpush1.msra.mxu0 0.0
      %667 = vmatprep.subr.mxu0 0.0
      %668 = vmatpush1.msra.mxu0 0.0
      %669 = vmatprep.subr.mxu0 0.0
      %670 = vmatpush1.msra.mxu0 0.0
      %671 = vmatprep.subr.mxu0 0.0
      %672 = vmatpush1.msra.mxu0 0.0
      %673 = vmatprep.subr.mxu0 0.0
      %674 = vmatpush1.msra.mxu0 0.0
      %675 = vmatprep.mubr.f32.mxu0 0.0
      %676 = vmatmul.mubr.f32.gmra.mrb[0].mxu0 %v603
      %v677 = vpop.f32.mrb[0].mxu0
      %v678 = vadd.f32 0.0, %v677
      %v679 = vpop.f32.mrb[0].mxu0
      %v680 = vadd.f32 0.0, %v679
      %681 = vdwg.mxu0
      %682 = vmatprep.subr.mxu0 0.0
      %683 = vmatpush1.msra.mxu0 %v609
      %684 = vmatprep.subr.mxu0 0.0
      %685 = vmatpush1.msra.mxu0 0.0
      %686 = vmatprep.subr.mxu0 0.0
      %687 = vmatpush1.msra.mxu0 0.0
      %688 = vmatprep.subr.mxu0 0.0
      %689 = vmatpush1.msra.mxu0 0.0
      %690 = vmatprep.subr.mxu0 0.0
      %691 = vmatpush1.msra.mxu0 0.0
      %692 = vmatprep.subr.mxu0 0.0
      %693 = vmatpush1.msra.mxu0 0.0
      %694 = vmatprep.subr.mxu0 0.0
      %695 = vmatpush1.msra.mxu0 0.0
      %696 = vmatprep.subr.mxu0 0.0
      %697 = vmatpush1.msra.mxu0 0.0
      %698 = vmatprep.subr.mxu0 0.0
      %699 = vmatpush1.msra.mxu0 0.0
      %700 = vmatprep.subr.mxu0 0.0
      %701 = vmatpush1.msra.mxu0 0.0
      %702 = vmatprep.subr.mxu0 0.0
      %703 = vmatpush1.msra.mxu0 0.0
      %704 = vmatprep.subr.mxu0 0.0
      %705 = vmatpush1.msra.mxu0 0.0
      %706 = vmatprep.subr.mxu0 0.0
      %707 = vmatpush1.msra.mxu0 0.0
      %708 = vmatprep.subr.mxu0 0.0
      %709 = vmatpush1.msra.mxu0 0.0
      %710 = vmatprep.subr.mxu0 0.0
      %711 = vmatpush1.msra.mxu0 0.0
      %712 = vmatprep.subr.mxu0 0.0
      %713 = vmatpush1.msra.mxu0 0.0
      %714 = vmatprep.subr.mxu0 0.0
      %715 = vmatpush1.msra.mxu0 0.0
      %716 = vmatprep.subr.mxu0 0.0
      %717 = vmatpush1.msra.mxu0 0.0
      %718 = vmatprep.subr.mxu0 0.0
      %719 = vmatpush1.msra.mxu0 0.0
      %720 = vmatprep.subr.mxu0 0.0
      %721 = vmatpush1.msra.mxu0 0.0
      %722 = vmatprep.subr.mxu0 0.0
      %723 = vmatpush1.msra.mxu0 0.0
      %724 = vmatprep.subr.mxu0 0.0
      %725 = vmatpush1.msra.mxu0 0.0
      %726 = vmatprep.subr.mxu0 0.0
      %727 = vmatpush1.msra.mxu0 0.0
      %728 = vmatprep.subr.mxu0 0.0
      %729 = vmatpush1.msra.mxu0 0.0
      %730 = vmatprep.subr.mxu0 0.0
      %731 = vmatpush1.msra.mxu0 0.0
      %732 = vmatprep.subr.mxu0 0.0
      %733 = vmatpush1.msra.mxu0 0.0
      %734 = vmatprep.subr.mxu0 0.0
      %735 = vmatpush1.msra.mxu0 0.0
      %736 = vmatprep.subr.mxu0 0.0
      %737 = vmatpush1.msra.mxu0 0.0
      %738 = vmatprep.subr.mxu0 0.0
      %739 = vmatpush1.msra.mxu0 0.0
      %740 = vmatprep.subr.mxu0 0.0
      %741 = vmatpush1.msra.mxu0 0.0
      %742 = vmatprep.subr.mxu0 0.0
      %743 = vmatpush1.msra.mxu0 0.0
      %744 = vmatprep.subr.mxu0 0.0
      %745 = vmatpush1.msra.mxu0 0.0
      %746 = vmatprep.mubr.f32.mxu0 0.0
      %747 = vmatmul.mubr.f32.gmra.mrb[0].mxu0 %v603
      %v748 = vpop.f32.mrb[0].mxu0
      %v749 = vadd.f32 0.0, %v748
      %v750 = vpop.f32.mrb[0].mxu0
      %751 = vdwg.mxu0
      %v752 = vadd.f32 %v517, %v678
      %v753 = vadd.f32 %v519, %v680
      %v754 = vadd.f32 %v588, %v749
      %s755 = scalar_lea.vmem %s2, 24
      %v756 = vld [vmem:[%s755] sm:$0xff]
      %757 = vrot.lane.b32.xlu0 %v272, 110
      %v758 = vpop.permute.xlu0 %757
      %759 = vrot.lane.b32.xlu0 %v279, 110
      %v760 = vpop.permute.xlu0 %759
      %761 = vrot.lane.b32.xlu0 %v273, 110
      %v762 = vpop.permute.xlu0 %761
      %vm763 = vcmask 900096
      %v764 = vsel %vm763, %v758, %v760
      %v765 = vsel %vm763, %v760, %v762
      %v767 = vsel %vm289, %v756, 0
      %v769 = vsel %vm293, %v764, 0
      %v771 = vsel %vm293, %v765, 0
      %v773 = vsel %vm293, %v762, 0
      %775 = vmatprep.subr.mxu0 %v771
      %776 = vmatpush1.msra.mxu0 %v769
      %777 = vmatprep.subr.mxu0 0.0
      %778 = vmatpush1.msra.mxu0 0.0
      %779 = vmatprep.subr.mxu0 0.0
      %780 = vmatpush1.msra.mxu0 0.0
      %781 = vmatprep.subr.mxu0 0.0
      %782 = vmatpush1.msra.mxu0 0.0
      %783 = vmatprep.subr.mxu0 0.0
      %784 = vmatpush1.msra.mxu0 0.0
      %785 = vmatprep.subr.mxu0 0.0
      %786 = vmatpush1.msra.mxu0 0.0
      %787 = vmatprep.subr.mxu0 0.0
      %788 = vmatpush1.msra.mxu0 0.0
      %789 = vmatprep.subr.mxu0 0.0
      %790 = vmatpush1.msra.mxu0 0.0
      %791 = vmatprep.subr.mxu0 0.0
      %792 = vmatpush1.msra.mxu0 0.0
      %793 = vmatprep.subr.mxu0 0.0
      %794 = vmatpush1.msra.mxu0 0.0
      %795 = vmatprep.subr.mxu0 0.0
      %796 = vmatpush1.msra.mxu0 0.0
      %797 = vmatprep.subr.mxu0 0.0
      %798 = vmatpush1.msra.mxu0 0.0
      %799 = vmatprep.subr.mxu0 0.0
      %800 = vmatpush1.msra.mxu0 0.0
      %801 = vmatprep.subr.mxu0 0.0
      %802 = vmatpush1.msra.mxu0 0.0
      %803 = vmatprep.subr.mxu0 0.0
      %804 = vmatpush1.msra.mxu0 0.0
      %805 = vmatprep.subr.mxu0 0.0
      %806 = vmatpush1.msra.mxu0 0.0
      %807 = vmatprep.subr.mxu0 0.0
      %808 = vmatpush1.msra.mxu0 0.0
      %809 = vmatprep.subr.mxu0 0.0
      %810 = vmatpush1.msra.mxu0 0.0
      %811 = vmatprep.subr.mxu0 0.0
      %812 = vmatpush1.msra.mxu0 0.0
      %813 = vmatprep.subr.mxu0 0.0
      %814 = vmatpush1.msra.mxu0 0.0
      %815 = vmatprep.subr.mxu0 0.0
      %816 = vmatpush1.msra.mxu0 0.0
      %817 = vmatprep.subr.mxu0 0.0
      %818 = vmatpush1.msra.mxu0 0.0
      %819 = vmatprep.subr.mxu0 0.0
      %820 = vmatpush1.msra.mxu0 0.0
      %821 = vmatprep.subr.mxu0 0.0
      %822 = vmatpush1.msra.mxu0 0.0
      %823 = vmatprep.subr.mxu0 0.0
      %824 = vmatpush1.msra.mxu0 0.0
      %825 = vmatprep.subr.mxu0 0.0
      %826 = vmatpush1.msra.mxu0 0.0
      %827 = vmatprep.subr.mxu0 0.0
      %828 = vmatpush1.msra.mxu0 0.0
      %829 = vmatprep.subr.mxu0 0.0
      %830 = vmatpush1.msra.mxu0 0.0
      %831 = vmatprep.subr.mxu0 0.0
      %832 = vmatpush1.msra.mxu0 0.0
      %833 = vmatprep.subr.mxu0 0.0
      %834 = vmatpush1.msra.mxu0 0.0
      %835 = vmatprep.subr.mxu0 0.0
      %836 = vmatpush1.msra.mxu0 0.0
      %837 = vmatprep.subr.mxu0 0.0
      %838 = vmatpush1.msra.mxu0 0.0
      %839 = vmatprep.mubr.f32.mxu0 0.0
      %840 = vmatmul.mubr.f32.gmra.mrb[0].mxu0 %v767
      %v841 = vpop.f32.mrb[0].mxu0
      %v842 = vadd.f32 0.0, %v841
      %v843 = vpop.f32.mrb[0].mxu0
      %v844 = vadd.f32 0.0, %v843
      %845 = vdwg.mxu0
      %846 = vmatprep.subr.mxu0 0.0
      %847 = vmatpush1.msra.mxu0 %v773
      %848 = vmatprep.subr.mxu0 0.0
      %849 = vmatpush1.msra.mxu0 0.0
      %850 = vmatprep.subr.mxu0 0.0
      %851 = vmatpush1.msra.mxu0 0.0
      %852 = vmatprep.subr.mxu0 0.0
      %853 = vmatpush1.msra.mxu0 0.0
      %854 = vmatprep.subr.mxu0 0.0
      %855 = vmatpush1.msra.mxu0 0.0
      %856 = vmatprep.subr.mxu0 0.0
      %857 = vmatpush1.msra.mxu0 0.0
      %858 = vmatprep.subr.mxu0 0.0
      %859 = vmatpush1.msra.mxu0 0.0
      %860 = vmatprep.subr.mxu0 0.0
      %861 = vmatpush1.msra.mxu0 0.0
      %862 = vmatprep.subr.mxu0 0.0
      %863 = vmatpush1.msra.mxu0 0.0
      %864 = vmatprep.subr.mxu0 0.0
      %865 = vmatpush1.msra.mxu0 0.0
      %866 = vmatprep.subr.mxu0 0.0
      %867 = vmatpush1.msra.mxu0 0.0
      %868 = vmatprep.subr.mxu0 0.0
      %869 = vmatpush1.msra.mxu0 0.0
      %870 = vmatprep.subr.mxu0 0.0
      %871 = vmatpush1.msra.mxu0 0.0
      %872 = vmatprep.subr.mxu0 0.0
      %873 = vmatpush1.msra.mxu0 0.0
      %874 = vmatprep.subr.mxu0 0.0
      %875 = vmatpush1.msra.mxu0 0.0
      %876 = vmatprep.subr.mxu0 0.0
      %877 = vmatpush1.msra.mxu0 0.0
      %878 = vmatprep.subr.mxu0 0.0
      %879 = vmatpush1.msra.mxu0 0.0
      %880 = vmatprep.subr.mxu0 0.0
      %881 = vmatpush1.msra.mxu0 0.0
      %882 = vmatprep.subr.mxu0 0.0
      %883 = vmatpush1.msra.mxu0 0.0
      %884 = vmatprep.subr.mxu0 0.0
      %885 = vmatpush1.msra.mxu0 0.0
      %886 = vmatprep.subr.mxu0 0.0
      %887 = vmatpush1.msra.mxu0 0.0
      %888 = vmatprep.subr.mxu0 0.0
      %889 = vmatpush1.msra.mxu0 0.0
      %890 = vmatprep.subr.mxu0 0.0
      %891 = vmatpush1.msra.mxu0 0.0
      %892 = vmatprep.subr.mxu0 0.0
      %893 = vmatpush1.msra.mxu0 0.0
      %894 = vmatprep.subr.mxu0 0.0
      %895 = vmatpush1.msra.mxu0 0.0
      %896 = vmatprep.subr.mxu0 0.0
      %897 = vmatpush1.msra.mxu0 0.0
      %898 = vmatprep.subr.mxu0 0.0
      %899 = vmatpush1.msra.mxu0 0.0
      %900 = vmatprep.subr.mxu0 0.0
      %901 = vmatpush1.msra.mxu0 0.0
      %902 = vmatprep.subr.mxu0 0.0
      %903 = vmatpush1.msra.mxu0 0.0
      %904 = vmatprep.subr.mxu0 0.0
      %905 = vmatpush1.msra.mxu0 0.0
      %906 = vmatprep.subr.mxu0 0.0
      %907 = vmatpush1.msra.mxu0 0.0
      %908 = vmatprep.subr.mxu0 0.0
      %909 = vmatpush1.msra.mxu0 0.0
      %910 = vmatprep.mubr.f32.mxu0 0.0
      %911 = vmatmul.mubr.f32.gmra.mrb[0].mxu0 %v767
      %v912 = vpop.f32.mrb[0].mxu0
      %v913 = vadd.f32 0.0, %v912
      %v914 = vpop.f32.mrb[0].mxu0
      %915 = vdwg.mxu0
      %v916 = vadd.f32 %v752, %v842
      %v917 = vadd.f32 %v753, %v844
      %v918 = vadd.f32 %v754, %v913
      %s919 = scalar_lea.vmem %s2, 32
      %v920 = vld [vmem:[%s919] sm:$0xff]
      %921 = vrot.lane.b32.xlu0 %v272, 109
      %v922 = vpop.permute.xlu0 %921
      %923 = vrot.lane.b32.xlu0 %v279, 109
      %v924 = vpop.permute.xlu0 %923
      %925 = vrot.lane.b32.xlu0 %v273, 109
      %v926 = vpop.permute.xlu0 %925
      %vm927 = vcmask 891904
      %v928 = vsel %vm927, %v922, %v924
      %v929 = vsel %vm927, %v924, %v926
      %v931 = vsel %vm289, %v920, 0
      %v933 = vsel %vm293, %v928, 0
      %v935 = vsel %vm293, %v929, 0
      %v937 = vsel %vm293, %v926, 0
      %939 = vmatprep.subr.mxu0 %v935
      %940 = vmatpush1.msra.mxu0 %v933
      %941 = vmatprep.subr.mxu0 0.0
      %942 = vmatpush1.msra.mxu0 0.0
      %943 = vmatprep.subr.mxu0 0.0
      %944 = vmatpush1.msra.mxu0 0.0
      %945 = vmatprep.subr.mxu0 0.0
      %946 = vmatpush1.msra.mxu0 0.0
      %947 = vmatprep.subr.mxu0 0.0
      %948 = vmatpush1.msra.mxu0 0.0
      %949 = vmatprep.subr.mxu0 0.0
      %950 = vmatpush1.msra.mxu0 0.0
      %951 = vmatprep.subr.mxu0 0.0
      %952 = vmatpush1.msra.mxu0 0.0
      %953 = vmatprep.subr.mxu0 0.0
      %954 = vmatpush1.msra.mxu0 0.0
      %955 = vmatprep.subr.mxu0 0.0
      %956 = vmatpush1.msra.mxu0 0.0
      %957 = vmatprep.subr.mxu0 0.0
      %958 = vmatpush1.msra.mxu0 0.0
      %959 = vmatprep.subr.mxu0 0.0
      %960 = vmatpush1.msra.mxu0 0.0
      %961 = vmatprep.subr.mxu0 0.0
      %962 = vmatpush1.msra.mxu0 0.0
      %963 = vmatprep.subr.mxu0 0.0
      %964 = vmatpush1.msra.mxu0 0.0
      %965 = vmatprep.subr.mxu0 0.0
      %966 = vmatpush1.msra.mxu0 0.0
      %967 = vmatprep.subr.mxu0 0.0
      %968 = vmatpush1.msra.mxu0 0.0
      %969 = vmatprep.subr.mxu0 0.0
      %970 = vmatpush1.msra.mxu0 0.0
      %971 = vmatprep.subr.mxu0 0.0
      %972 = vmatpush1.msra.mxu0 0.0
      %973 = vmatprep.subr.mxu0 0.0
      %974 = vmatpush1.msra.mxu0 0.0
      %975 = vmatprep.subr.mxu0 0.0
      %976 = vmatpush1.msra.mxu0 0.0
      %977 = vmatprep.subr.mxu0 0.0
      %978 = vmatpush1.msra.mxu0 0.0
      %979 = vmatprep.subr.mxu0 0.0
      %980 = vmatpush1.msra.mxu0 0.0
      %981 = vmatprep.subr.mxu0 0.0
      %982 = vmatpush1.msra.mxu0 0.0
      %983 = vmatprep.subr.mxu0 0.0
      %984 = vmatpush1.msra.mxu0 0.0
      %985 = vmatprep.subr.mxu0 0.0
      %986 = vmatpush1.msra.mxu0 0.0
      %987 = vmatprep.subr.mxu0 0.0
      %988 = vmatpush1.msra.mxu0 0.0
      %989 = vmatprep.subr.mxu0 0.0
      %990 = vmatpush1.msra.mxu0 0.0
      %991 = vmatprep.subr.mxu0 0.0
      %992 = vmatpush1.msra.mxu0 0.0
      %993 = vmatprep.subr.mxu0 0.0
      %994 = vmatpush1.msra.mxu0 0.0
      %995 = vmatprep.subr.mxu0 0.0
      %996 = vmatpush1.msra.mxu0 0.0
      %997 = vmatprep.subr.mxu0 0.0
      %998 = vmatpush1.msra.mxu0 0.0
      %999 = vmatprep.subr.mxu0 0.0
      %1000 = vmatpush1.msra.mxu0 0.0
      %1001 = vmatprep.subr.mxu0 0.0
      %1002 = vmatpush1.msra.mxu0 0.0
      %1003 = vmatprep.mubr.f32.mxu0 0.0
      %1004 = vmatmul.mubr.f32.gmra.mrb[0].mxu0 %v931
      %v1005 = vpop.f32.mrb[0].mxu0
      %v1006 = vadd.f32 0.0, %v1005
      %v1007 = vpop.f32.mrb[0].mxu0
      %v1008 = vadd.f32 0.0, %v1007
      %1009 = vdwg.mxu0
      %1010 = vmatprep.subr.mxu0 0.0
      %1011 = vmatpush1.msra.mxu0 %v937
      %1012 = vmatprep.subr.mxu0 0.0
      %1013 = vmatpush1.msra.mxu0 0.0
      %1014 = vmatprep.subr.mxu0 0.0
      %1015 = vmatpush1.msra.mxu0 0.0
      %1016 = vmatprep.subr.mxu0 0.0
      %1017 = vmatpush1.msra.mxu0 0.0
      %1018 = vmatprep.subr.mxu0 0.0
      %1019 = vmatpush1.msra.mxu0 0.0
      %1020 = vmatprep.subr.mxu0 0.0
      %1021 = vmatpush1.msra.mxu0 0.0
      %1022 = vmatprep.subr.mxu0 0.0
      %1023 = vmatpush1.msra.mxu0 0.0
      %1024 = vmatprep.subr.mxu0 0.0
      %1025 = vmatpush1.msra.mxu0 0.0
      %1026 = vmatprep.subr.mxu0 0.0
      %1027 = vmatpush1.msra.mxu0 0.0
      %1028 = vmatprep.subr.mxu0 0.0
      %1029 = vmatpush1.msra.mxu0 0.0
      %1030 = vmatprep.subr.mxu0 0.0
      %1031 = vmatpush1.msra.mxu0 0.0
      %1032 = vmatprep.subr.mxu0 0.0
      %1033 = vmatpush1.msra.mxu0 0.0
      %1034 = vmatprep.subr.mxu0 0.0
      %1035 = vmatpush1.msra.mxu0 0.0
      %1036 = vmatprep.subr.mxu0 0.0
      %1037 = vmatpush1.msra.mxu0 0.0
      %1038 = vmatprep.subr.mxu0 0.0
      %1039 = vmatpush1.msra.mxu0 0.0
      %1040 = vmatprep.subr.mxu0 0.0
      %1041 = vmatpush1.msra.mxu0 0.0
      %1042 = vmatprep.subr.mxu0 0.0
      %1043 = vmatpush1.msra.mxu0 0.0
      %1044 = vmatprep.subr.mxu0 0.0
      %1045 = vmatpush1.msra.mxu0 0.0
      %1046 = vmatprep.subr.mxu0 0.0
      %1047 = vmatpush1.msra.mxu0 0.0
      %1048 = vmatprep.subr.mxu0 0.0
      %1049 = vmatpush1.msra.mxu0 0.0
      %1050 = vmatprep.subr.mxu0 0.0
      %1051 = vmatpush1.msra.mxu0 0.0
      %1052 = vmatprep.subr.mxu0 0.0
      %1053 = vmatpush1.msra.mxu0 0.0
      %1054 = vmatprep.subr.mxu0 0.0
      %1055 = vmatpush1.msra.mxu0 0.0
      %1056 = vmatprep.subr.mxu0 0.0
      %1057 = vmatpush1.msra.mxu0 0.0
      %1058 = vmatprep.subr.mxu0 0.0
      %1059 = vmatpush1.msra.mxu0 0.0
      %1060 = vmatprep.subr.mxu0 0.0
      %1061 = vmatpush1.msra.mxu0 0.0
      %1062 = vmatprep.subr.mxu0 0.0
      %1063 = vmatpush1.msra.mxu0 0.0
      %1064 = vmatprep.subr.mxu0 0.0
      %1065 = vmatpush1.msra.mxu0 0.0
      %1066 = vmatprep.subr.mxu0 0.0
      %1067 = vmatpush1.msra.mxu0 0.0
      %1068 = vmatprep.subr.mxu0 0.0
      %1069 = vmatpush1.msra.mxu0 0.0
      %1070 = vmatprep.subr.mxu0 0.0
      %1071 = vmatpush1.msra.mxu0 0.0
      %1072 = vmatprep.subr.mxu0 0.0
      %1073 = vmatpush1.msra.mxu0 0.0
      %1074 = vmatprep.mubr.f32.mxu0 0.0
      %1075 = vmatmul.mubr.f32.gmra.mrb[0].mxu0 %v931
      %v1076 = vpop.f32.mrb[0].mxu0
      %v1077 = vadd.f32 0.0, %v1076
      %v1078 = vpop.f32.mrb[0].mxu0
      %1079 = vdwg.mxu0
      %v1080 = vadd.f32 %v916, %v1006
      %v1081 = vadd.f32 %v917, %v1008
      %v1082 = vadd.f32 %v918, %v1077
      %s1083 = scalar_lea.vmem %s2, 40
      %v1084 = vld [vmem:[%s1083] sm:$0xff]
      %1085 = vrot.lane.b32.xlu0 %v272, 108
      %v1086 = vpop.permute.xlu0 %1085
      %1087 = vrot.lane.b32.xlu0 %v279, 108
      %v1088 = vpop.permute.xlu0 %1087
      %1089 = vrot.lane.b32.xlu0 %v273, 108
      %v1090 = vpop.permute.xlu0 %1089
      %vm1091 = vcmask 883712
      %v1092 = vsel %vm1091, %v1086, %v1088
      %v1093 = vsel %vm1091, %v1088, %v1090
      %v1095 = vsel %vm289, %v1084, 0
      %v1097 = vsel %vm293, %v1092, 0
      %v1099 = vsel %vm293, %v1093, 0
      %v1101 = vsel %vm293, %v1090, 0
      %1103 = vmatprep.subr.mxu0 %v1099
      %1104 = vmatpush1.msra.mxu0 %v1097
      %1105 = vmatprep.subr.mxu0 0.0
      %1106 = vmatpush1.msra.mxu0 0.0
      %1107 = vmatprep.subr.mxu0 0.0
      %1108 = vmatpush1.msra.mxu0 0.0
      %1109 = vmatprep.subr.mxu0 0.0
      %1110 = vmatpush1.msra.mxu0 0.0
      %1111 = vmatprep.subr.mxu0 0.0
      %1112 = vmatpush1.msra.mxu0 0.0
      %1113 = vmatprep.subr.mxu0 0.0
      %1114 = vmatpush1.msra.mxu0 0.0
      %1115 = vmatprep.subr.mxu0 0.0
      %1116 = vmatpush1.msra.mxu0 0.0
      %1117 = vmatprep.subr.mxu0 0.0
      %1118 = vmatpush1.msra.mxu0 0.0
      %1119 = vmatprep.subr.mxu0 0.0
      %1120 = vmatpush1.msra.mxu0 0.0
      %1121 = vmatprep.subr.mxu0 0.0
      %1122 = vmatpush1.msra.mxu0 0.0
      %1123 = vmatprep.subr.mxu0 0.0
      %1124 = vmatpush1.msra.mxu0 0.0
      %1125 = vmatprep.subr.mxu0 0.0
      %1126 = vmatpush1.msra.mxu0 0.0
      %1127 = vmatprep.subr.mxu0 0.0
      %1128 = vmatpush1.msra.mxu0 0.0
      %1129 = vmatprep.subr.mxu0 0.0
      %1130 = vmatpush1.msra.mxu0 0.0
      %1131 = vmatprep.subr.mxu0 0.0
      %1132 = vmatpush1.msra.mxu0 0.0
      %1133 = vmatprep.subr.mxu0 0.0
      %1134 = vmatpush1.msra.mxu0 0.0
      %1135 = vmatprep.subr.mxu0 0.0
      %1136 = vmatpush1.msra.mxu0 0.0
      %1137 = vmatprep.subr.mxu0 0.0
      %1138 = vmatpush1.msra.mxu0 0.0
      %1139 = vmatprep.subr.mxu0 0.0
      %1140 = vmatpush1.msra.mxu0 0.0
      %1141 = vmatprep.subr.mxu0 0.0
      %1142 = vmatpush1.msra.mxu0 0.0
      %1143 = vmatprep.subr.mxu0 0.0
      %1144 = vmatpush1.msra.mxu0 0.0
      %1145 = vmatprep.subr.mxu0 0.0
      %1146 = vmatpush1.msra.mxu0 0.0
      %1147 = vmatprep.subr.mxu0 0.0
      %1148 = vmatpush1.msra.mxu0 0.0
      %1149 = vmatprep.subr.mxu0 0.0
      %1150 = vmatpush1.msra.mxu0 0.0
      %1151 = vmatprep.subr.mxu0 0.0
      %1152 = vmatpush1.msra.mxu0 0.0
      %1153 = vmatprep.subr.mxu0 0.0
      %1154 = vmatpush1.msra.mxu0 0.0
      %1155 = vmatprep.subr.mxu0 0.0
      %1156 = vmatpush1.msra.mxu0 0.0
      %1157 = vmatprep.subr.mxu0 0.0
      %1158 = vmatpush1.msra.mxu0 0.0
      %1159 = vmatprep.subr.mxu0 0.0
      %1160 = vmatpush1.msra.mxu0 0.0
      %1161 = vmatprep.subr.mxu0 0.0
      %1162 = vmatpush1.msra.mxu0 0.0
      %1163 = vmatprep.subr.mxu0 0.0
      %1164 = vmatpush1.msra.mxu0 0.0
      %1165 = vmatprep.subr.mxu0 0.0
      %1166 = vmatpush1.msra.mxu0 0.0
      %1167 = vmatprep.mubr.f32.mxu0 0.0
      %1168 = vmatmul.mubr.f32.gmra.mrb[0].mxu0 %v1095
      %v1169 = vpop.f32.mrb[0].mxu0
      %v1170 = vadd.f32 0.0, %v1169
      %v1171 = vpop.f32.mrb[0].mxu0
      %v1172 = vadd.f32 0.0, %v1171
      %1173 = vdwg.mxu0
      %1174 = vmatprep.subr.mxu0 0.0
      %1175 = vmatpush1.msra.mxu0 %v1101
      %1176 = vmatprep.subr.mxu0 0.0
      %1177 = vmatpush1.msra.mxu0 0.0
      %1178 = vmatprep.subr.mxu0 0.0
      %1179 = vmatpush1.msra.mxu0 0.0
      %1180 = vmatprep.subr.mxu0 0.0
      %1181 = vmatpush1.msra.mxu0 0.0
      %1182 = vmatprep.subr.mxu0 0.0
      %1183 = vmatpush1.msra.mxu0 0.0
      %1184 = vmatprep.subr.mxu0 0.0
      %1185 = vmatpush1.msra.mxu0 0.0
      %1186 = vmatprep.subr.mxu0 0.0
      %1187 = vmatpush1.msra.mxu0 0.0
      %1188 = vmatprep.subr.mxu0 0.0
      %1189 = vmatpush1.msra.mxu0 0.0
      %1190 = vmatprep.subr.mxu0 0.0
      %1191 = vmatpush1.msra.mxu0 0.0
      %1192 = vmatprep.subr.mxu0 0.0
      %1193 = vmatpush1.msra.mxu0 0.0
      %1194 = vmatprep.subr.mxu0 0.0
      %1195 = vmatpush1.msra.mxu0 0.0
      %1196 = vmatprep.subr.mxu0 0.0
      %1197 = vmatpush1.msra.mxu0 0.0
      %1198 = vmatprep.subr.mxu0 0.0
      %1199 = vmatpush1.msra.mxu0 0.0
      %1200 = vmatprep.subr.mxu0 0.0
      %1201 = vmatpush1.msra.mxu0 0.0
      %1202 = vmatprep.subr.mxu0 0.0
      %1203 = vmatpush1.msra.mxu0 0.0
      %1204 = vmatprep.subr.mxu0 0.0
      %1205 = vmatpush1.msra.mxu0 0.0
      %1206 = vmatprep.subr.mxu0 0.0
      %1207 = vmatpush1.msra.mxu0 0.0
      %1208 = vmatprep.subr.mxu0 0.0
      %1209 = vmatpush1.msra.mxu0 0.0
      %1210 = vmatprep.subr.mxu0 0.0
      %1211 = vmatpush1.msra.mxu0 0.0
      %1212 = vmatprep.subr.mxu0 0.0
      %1213 = vmatpush1.msra.mxu0 0.0
      %1214 = vmatprep.subr.mxu0 0.0
      %1215 = vmatpush1.msra.mxu0 0.0
      %1216 = vmatprep.subr.mxu0 0.0
      %1217 = vmatpush1.msra.mxu0 0.0
      %1218 = vmatprep.subr.mxu0 0.0
      %1219 = vmatpush1.msra.mxu0 0.0
      %1220 = vmatprep.subr.mxu0 0.0
      %1221 = vmatpush1.msra.mxu0 0.0
      %1222 = vmatprep.subr.mxu0 0.0
      %1223 = vmatpush1.msra.mxu0 0.0
      %1224 = vmatprep.subr.mxu0 0.0
      %1225 = vmatpush1.msra.mxu0 0.0
      %1226 = vmatprep.subr.mxu0 0.0
      %1227 = vmatpush1.msra.mxu0 0.0
      %1228 = vmatprep.subr.mxu0 0.0
      %1229 = vmatpush1.msra.mxu0 0.0
      %1230 = vmatprep.subr.mxu0 0.0
      %1231 = vmatpush1.msra.mxu0 0.0
      %1232 = vmatprep.subr.mxu0 0.0
      %1233 = vmatpush1.msra.mxu0 0.0
      %1234 = vmatprep.subr.mxu0 0.0
      %1235 = vmatpush1.msra.mxu0 0.0
      %1236 = vmatprep.subr.mxu0 0.0
      %1237 = vmatpush1.msra.mxu0 0.0
      %1238 = vmatprep.mubr.f32.mxu0 0.0
      %1239 = vmatmul.mubr.f32.gmra.mrb[0].mxu0 %v1095
      %v1240 = vpop.f32.mrb[0].mxu0
      %v1241 = vadd.f32 0.0, %v1240
      %v1242 = vpop.f32.mrb[0].mxu0
      %1243 = vdwg.mxu0
      %v1244 = vadd.f32 %v1080, %v1170
      %v1245 = vadd.f32 %v1081, %v1172
      %v1246 = vadd.f32 %v1082, %v1241
      %s1247 = scalar_lea.vmem %s2, 48
      %v1248 = vld [vmem:[%s1247] sm:$0xff]
      %1249 = vrot.lane.b32.xlu0 %v272, 92
      %v1250 = vpop.permute.xlu0 %1249
      %1251 = vrot.lane.b32.xlu0 %v279, 92
      %v1252 = vpop.permute.xlu0 %1251
      %1253 = vrot.lane.b32.xlu0 %v273, 92
      %v1254 = vpop.permute.xlu0 %1253
      %vm1255 = vcmask 752640
      %v1256 = vsel %vm1255, %v1250, %v1252
      %v1257 = vsel %vm1255, %v1252, %v1254
      %v1259 = vsel %vm289, %v1248, 0
      %v1261 = vsel %vm293, %v1256, 0
      %v1263 = vsel %vm293, %v1257, 0
      %v1265 = vsel %vm293, %v1254, 0
      %1267 = vmatprep.subr.mxu0 %v1263
      %1268 = vmatpush1.msra.mxu0 %v1261
      %1269 = vmatprep.subr.mxu0 0.0
      %1270 = vmatpush1.msra.mxu0 0.0
      %1271 = vmatprep.subr.mxu0 0.0
      %1272 = vmatpush1.msra.mxu0 0.0
      %1273 = vmatprep.subr.mxu0 0.0
      %1274 = vmatpush1.msra.mxu0 0.0
      %1275 = vmatprep.subr.mxu0 0.0
      %1276 = vmatpush1.msra.mxu0 0.0
      %1277 = vmatprep.subr.mxu0 0.0
      %1278 = vmatpush1.msra.mxu0 0.0
      %1279 = vmatprep.subr.mxu0 0.0
      %1280 = vmatpush1.msra.mxu0 0.0
      %1281 = vmatprep.subr.mxu0 0.0
      %1282 = vmatpush1.msra.mxu0 0.0
      %1283 = vmatprep.subr.mxu0 0.0
      %1284 = vmatpush1.msra.mxu0 0.0
      %1285 = vmatprep.subr.mxu0 0.0
      %1286 = vmatpush1.msra.mxu0 0.0
      %1287 = vmatprep.subr.mxu0 0.0
      %1288 = vmatpush1.msra.mxu0 0.0
      %1289 = vmatprep.subr.mxu0 0.0
      %1290 = vmatpush1.msra.mxu0 0.0
      %1291 = vmatprep.subr.mxu0 0.0
      %1292 = vmatpush1.msra.mxu0 0.0
      %1293 = vmatprep.subr.mxu0 0.0
      %1294 = vmatpush1.msra.mxu0 0.0
      %1295 = vmatprep.subr.mxu0 0.0
      %1296 = vmatpush1.msra.mxu0 0.0
      %1297 = vmatprep.subr.mxu0 0.0
      %1298 = vmatpush1.msra.mxu0 0.0
      %1299 = vmatprep.subr.mxu0 0.0
      %1300 = vmatpush1.msra.mxu0 0.0
      %1301 = vmatprep.subr.mxu0 0.0
      %1302 = vmatpush1.msra.mxu0 0.0
      %1303 = vmatprep.subr.mxu0 0.0
      %1304 = vmatpush1.msra.mxu0 0.0
      %1305 = vmatprep.subr.mxu0 0.0
      %1306 = vmatpush1.msra.mxu0 0.0
      %1307 = vmatprep.subr.mxu0 0.0
      %1308 = vmatpush1.msra.mxu0 0.0
      %1309 = vmatprep.subr.mxu0 0.0
      %1310 = vmatpush1.msra.mxu0 0.0
      %1311 = vmatprep.subr.mxu0 0.0
      %1312 = vmatpush1.msra.mxu0 0.0
      %1313 = vmatprep.subr.mxu0 0.0
      %1314 = vmatpush1.msra.mxu0 0.0
      %1315 = vmatprep.subr.mxu0 0.0
      %1316 = vmatpush1.msra.mxu0 0.0
      %1317 = vmatprep.subr.mxu0 0.0
      %1318 = vmatpush1.msra.mxu0 0.0
      %1319 = vmatprep.subr.mxu0 0.0
      %1320 = vmatpush1.msra.mxu0 0.0
      %1321 = vmatprep.subr.mxu0 0.0
      %1322 = vmatpush1.msra.mxu0 0.0
      %1323 = vmatprep.subr.mxu0 0.0
      %1324 = vmatpush1.msra.mxu0 0.0
      %1325 = vmatprep.subr.mxu0 0.0
      %1326 = vmatpush1.msra.mxu0 0.0
      %1327 = vmatprep.subr.mxu0 0.0
      %1328 = vmatpush1.msra.mxu0 0.0
      %1329 = vmatprep.subr.mxu0 0.0
      %1330 = vmatpush1.msra.mxu0 0.0
      %1331 = vmatprep.mubr.f32.mxu0 0.0
      %1332 = vmatmul.mubr.f32.gmra.mrb[0].mxu0 %v1259
      %v1333 = vpop.f32.mrb[0].mxu0
      %v1334 = vadd.f32 0.0, %v1333
      %v1335 = vpop.f32.mrb[0].mxu0
      %v1336 = vadd.f32 0.0, %v1335
      %1337 = vdwg.mxu0
      %1338 = vmatprep.subr.mxu0 0.0
      %1339 = vmatpush1.msra.mxu0 %v1265
      %1340 = vmatprep.subr.mxu0 0.0
      %1341 = vmatpush1.msra.mxu0 0.0
      %1342 = vmatprep.subr.mxu0 0.0
      %1343 = vmatpush1.msra.mxu0 0.0
      %1344 = vmatprep.subr.mxu0 0.0
      %1345 = vmatpush1.msra.mxu0 0.0
      %1346 = vmatprep.subr.mxu0 0.0
      %1347 = vmatpush1.msra.mxu0 0.0
      %1348 = vmatprep.subr.mxu0 0.0
      %1349 = vmatpush1.msra.mxu0 0.0
      %1350 = vmatprep.subr.mxu0 0.0
      %1351 = vmatpush1.msra.mxu0 0.0
      %1352 = vmatprep.subr.mxu0 0.0
      %1353 = vmatpush1.msra.mxu0 0.0
      %1354 = vmatprep.subr.mxu0 0.0
      %1355 = vmatpush1.msra.mxu0 0.0
      %1356 = vmatprep.subr.mxu0 0.0
      %1357 = vmatpush1.msra.mxu0 0.0
      %1358 = vmatprep.subr.mxu0 0.0
      %1359 = vmatpush1.msra.mxu0 0.0
      %1360 = vmatprep.subr.mxu0 0.0
      %1361 = vmatpush1.msra.mxu0 0.0
      %1362 = vmatprep.subr.mxu0 0.0
      %1363 = vmatpush1.msra.mxu0 0.0
      %1364 = vmatprep.subr.mxu0 0.0
      %1365 = vmatpush1.msra.mxu0 0.0
      %1366 = vmatprep.subr.mxu0 0.0
      %1367 = vmatpush1.msra.mxu0 0.0
      %1368 = vmatprep.subr.mxu0 0.0
      %1369 = vmatpush1.msra.mxu0 0.0
      %1370 = vmatprep.subr.mxu0 0.0
      %1371 = vmatpush1.msra.mxu0 0.0
      %1372 = vmatprep.subr.mxu0 0.0
      %1373 = vmatpush1.msra.mxu0 0.0
      %1374 = vmatprep.subr.mxu0 0.0
      %1375 = vmatpush1.msra.mxu0 0.0
      %1376 = vmatprep.subr.mxu0 0.0
      %1377 = vmatpush1.msra.mxu0 0.0
      %1378 = vmatprep.subr.mxu0 0.0
      %1379 = vmatpush1.msra.mxu0 0.0
      %1380 = vmatprep.subr.mxu0 0.0
      %1381 = vmatpush1.msra.mxu0 0.0
      %1382 = vmatprep.subr.mxu0 0.0
      %1383 = vmatpush1.msra.mxu0 0.0
      %1384 = vmatprep.subr.mxu0 0.0
      %1385 = vmatpush1.msra.mxu0 0.0
      %1386 = vmatprep.subr.mxu0 0.0
      %1387 = vmatpush1.msra.mxu0 0.0
      %1388 = vmatprep.subr.mxu0 0.0
      %1389 = vmatpush1.msra.mxu0 0.0
      %1390 = vmatprep.subr.mxu0 0.0
      %1391 = vmatpush1.msra.mxu0 0.0
      %1392 = vmatprep.subr.mxu0 0.0
      %1393 = vmatpush1.msra.mxu0 0.0
      %1394 = vmatprep.subr.mxu0 0.0
      %1395 = vmatpush1.msra.mxu0 0.0
      %1396 = vmatprep.subr.mxu0 0.0
      %1397 = vmatpush1.msra.mxu0 0.0
      %1398 = vmatprep.subr.mxu0 0.0
      %1399 = vmatpush1.msra.mxu0 0.0
      %1400 = vmatprep.subr.mxu0 0.0
      %1401 = vmatpush1.msra.mxu0 0.0
      %1402 = vmatprep.mubr.f32.mxu0 0.0
      %1403 = vmatmul.mubr.f32.gmra.mrb[0].mxu0 %v1259
      %v1404 = vpop.f32.mrb[0].mxu0
      %v1405 = vadd.f32 0.0, %v1404
      %v1406 = vpop.f32.mrb[0].mxu0
      %1407 = vdwg.mxu0
      %v1408 = vadd.f32 %v1244, %v1334
      %v1409 = vadd.f32 %v1245, %v1336
      %v1410 = vadd.f32 %v1246, %v1405
      %s1411 = scalar_lea.vmem %s2, 56
      %v1412 = vld [vmem:[%s1411] sm:$0xff]
      %1413 = vrot.lane.b32.xlu0 %v272, 91
      %v1414 = vpop.permute.xlu0 %1413
      %1415 = vrot.lane.b32.xlu0 %v279, 91
      %v1416 = vpop.permute.xlu0 %1415
      %1417 = vrot.lane.b32.xlu0 %v273, 91
      %v1418 = vpop.permute.xlu0 %1417
      %vm1419 = vcmask 744448
      %v1420 = vsel %vm1419, %v1414, %v1416
      %v1421 = vsel %vm1419, %v1416, %v1418
      %v1423 = vsel %vm289, %v1412, 0
      %v1425 = vsel %vm293, %v1420, 0
      %v1427 = vsel %vm293, %v1421, 0
      %v1429 = vsel %vm293, %v1418, 0
      %1431 = vmatprep.subr.mxu0 %v1427
      %1432 = vmatpush1.msra.mxu0 %v1425
      %1433 = vmatprep.subr.mxu0 0.0
      %1434 = vmatpush1.msra.mxu0 0.0
      %1435 = vmatprep.subr.mxu0 0.0
      %1436 = vmatpush1.msra.mxu0 0.0
      %1437 = vmatprep.subr.mxu0 0.0
      %1438 = vmatpush1.msra.mxu0 0.0
      %1439 = vmatprep.subr.mxu0 0.0
      %1440 = vmatpush1.msra.mxu0 0.0
      %1441 = vmatprep.subr.mxu0 0.0
      %1442 = vmatpush1.msra.mxu0 0.0
      %1443 = vmatprep.subr.mxu0 0.0
      %1444 = vmatpush1.msra.mxu0 0.0
      %1445 = vmatprep.subr.mxu0 0.0
      %1446 = vmatpush1.msra.mxu0 0.0
      %1447 = vmatprep.subr.mxu0 0.0
      %1448 = vmatpush1.msra.mxu0 0.0
      %1449 = vmatprep.subr.mxu0 0.0
      %1450 = vmatpush1.msra.mxu0 0.0
      %1451 = vmatprep.subr.mxu0 0.0
      %1452 = vmatpush1.msra.mxu0 0.0
      %1453 = vmatprep.subr.mxu0 0.0
      %1454 = vmatpush1.msra.mxu0 0.0
      %1455 = vmatprep.subr.mxu0 0.0
      %1456 = vmatpush1.msra.mxu0 0.0
      %1457 = vmatprep.subr.mxu0 0.0
      %1458 = vmatpush1.msra.mxu0 0.0
      %1459 = vmatprep.subr.mxu0 0.0
      %1460 = vmatpush1.msra.mxu0 0.0
      %1461 = vmatprep.subr.mxu0 0.0
      %1462 = vmatpush1.msra.mxu0 0.0
      %1463 = vmatprep.subr.mxu0 0.0
      %1464 = vmatpush1.msra.mxu0 0.0
      %1465 = vmatprep.subr.mxu0 0.0
      %1466 = vmatpush1.msra.mxu0 0.0
      %1467 = vmatprep.subr.mxu0 0.0
      %1468 = vmatpush1.msra.mxu0 0.0
      %1469 = vmatprep.subr.mxu0 0.0
      %1470 = vmatpush1.msra.mxu0 0.0
      %1471 = vmatprep.subr.mxu0 0.0
      %1472 = vmatpush1.msra.mxu0 0.0
      %1473 = vmatprep.subr.mxu0 0.0
      %1474 = vmatpush1.msra.mxu0 0.0
      %1475 = vmatprep.subr.mxu0 0.0
      %1476 = vmatpush1.msra.mxu0 0.0
      %1477 = vmatprep.subr.mxu0 0.0
      %1478 = vmatpush1.msra.mxu0 0.0
      %1479 = vmatprep.subr.mxu0 0.0
      %1480 = vmatpush1.msra.mxu0 0.0
      %1481 = vmatprep.subr.mxu0 0.0
      %1482 = vmatpush1.msra.mxu0 0.0
      %1483 = vmatprep.subr.mxu0 0.0
      %1484 = vmatpush1.msra.mxu0 0.0
      %1485 = vmatprep.subr.mxu0 0.0
      %1486 = vmatpush1.msra.mxu0 0.0
      %1487 = vmatprep.subr.mxu0 0.0
      %1488 = vmatpush1.msra.mxu0 0.0
      %1489 = vmatprep.subr.mxu0 0.0
      %1490 = vmatpush1.msra.mxu0 0.0
      %1491 = vmatprep.subr.mxu0 0.0
      %1492 = vmatpush1.msra.mxu0 0.0
      %1493 = vmatprep.subr.mxu0 0.0
      %1494 = vmatpush1.msra.mxu0 0.0
      %1495 = vmatprep.mubr.f32.mxu0 0.0
      %1496 = vmatmul.mubr.f32.gmra.mrb[0].mxu0 %v1423
      %v1497 = vpop.f32.mrb[0].mxu0
      %v1498 = vadd.f32 0.0, %v1497
      %v1499 = vpop.f32.mrb[0].mxu0
      %v1500 = vadd.f32 0.0, %v1499
      %1501 = vdwg.mxu0
      %1502 = vmatprep.subr.mxu0 0.0
      %1503 = vmatpush1.msra.mxu0 %v1429
      %1504 = vmatprep.subr.mxu0 0.0
      %1505 = vmatpush1.msra.mxu0 0.0
      %1506 = vmatprep.subr.mxu0 0.0
      %1507 = vmatpush1.msra.mxu0 0.0
      %1508 = vmatprep.subr.mxu0 0.0
      %1509 = vmatpush1.msra.mxu0 0.0
      %1510 = vmatprep.subr.mxu0 0.0
      %1511 = vmatpush1.msra.mxu0 0.0
      %1512 = vmatprep.subr.mxu0 0.0
      %1513 = vmatpush1.msra.mxu0 0.0
      %1514 = vmatprep.subr.mxu0 0.0
      %1515 = vmatpush1.msra.mxu0 0.0
      %1516 = vmatprep.subr.mxu0 0.0
      %1517 = vmatpush1.msra.mxu0 0.0
      %1518 = vmatprep.subr.mxu0 0.0
      %1519 = vmatpush1.msra.mxu0 0.0
      %1520 = vmatprep.subr.mxu0 0.0
      %1521 = vmatpush1.msra.mxu0 0.0
      %1522 = vmatprep.subr.mxu0 0.0
      %1523 = vmatpush1.msra.mxu0 0.0
      %1524 = vmatprep.subr.mxu0 0.0
      %1525 = vmatpush1.msra.mxu0 0.0
      %1526 = vmatprep.subr.mxu0 0.0
      %1527 = vmatpush1.msra.mxu0 0.0
      %1528 = vmatprep.subr.mxu0 0.0
      %1529 = vmatpush1.msra.mxu0 0.0
      %1530 = vmatprep.subr.mxu0 0.0
      %1531 = vmatpush1.msra.mxu0 0.0
      %1532 = vmatprep.subr.mxu0 0.0
      %1533 = vmatpush1.msra.mxu0 0.0
      %1534 = vmatprep.subr.mxu0 0.0
      %1535 = vmatpush1.msra.mxu0 0.0
      %1536 = vmatprep.subr.mxu0 0.0
      %1537 = vmatpush1.msra.mxu0 0.0
      %1538 = vmatprep.subr.mxu0 0.0
      %1539 = vmatpush1.msra.mxu0 0.0
      %1540 = vmatprep.subr.mxu0 0.0
      %1541 = vmatpush1.msra.mxu0 0.0
      %1542 = vmatprep.subr.mxu0 0.0
      %1543 = vmatpush1.msra.mxu0 0.0
      %1544 = vmatprep.subr.mxu0 0.0
      %1545 = vmatpush1.msra.mxu0 0.0
      %1546 = vmatprep.subr.mxu0 0.0
      %1547 = vmatpush1.msra.mxu0 0.0
      %1548 = vmatprep.subr.mxu0 0.0
      %1549 = vmatpush1.msra.mxu0 0.0
      %1550 = vmatprep.subr.mxu0 0.0
      %1551 = vmatpush1.msra.mxu0 0.0
      %1552 = vmatprep.subr.mxu0 0.0
      %1553 = vmatpush1.msra.mxu0 0.0
      %1554 = vmatprep.subr.mxu0 0.0
      %1555 = vmatpush1.msra.mxu0 0.0
      %1556 = vmatprep.subr.mxu0 0.0
      %1557 = vmatpush1.msra.mxu0 0.0
      %1558 = vmatprep.subr.mxu0 0.0
      %1559 = vmatpush1.msra.mxu0 0.0
      %1560 = vmatprep.subr.mxu0 0.0
      %1561 = vmatpush1.msra.mxu0 0.0
      %1562 = vmatprep.subr.mxu0 0.0
      %1563 = vmatpush1.msra.mxu0 0.0
      %1564 = vmatprep.subr.mxu0 0.0
      %1565 = vmatpush1.msra.mxu0 0.0
      %1566 = vmatprep.mubr.f32.mxu0 0.0
      %1567 = vmatmul.mubr.f32.gmra.mrb[0].mxu0 %v1423
      %v1568 = vpop.f32.mrb[0].mxu0
      %v1569 = vadd.f32 0.0, %v1568
      %v1570 = vpop.f32.mrb[0].mxu0
      %1571 = vdwg.mxu0
      %v1572 = vadd.f32 %v1408, %v1498
      %v1573 = vadd.f32 %v1409, %v1500
      %v1574 = vadd.f32 %v1410, %v1569
      %s1575 = scalar_lea.vmem %s2, 64
      %v1576 = vld [vmem:[%s1575] sm:$0xff]
      %1577 = vrot.lane.b32.xlu0 %v272, 90
      %v1578 = vpop.permute.xlu0 %1577
      %1579 = vrot.lane.b32.xlu0 %v279, 90
      %v1580 = vpop.permute.xlu0 %1579
      %1581 = vrot.lane.b32.xlu0 %v273, 90
      %v1582 = vpop.permute.xlu0 %1581
      %vm1583 = vcmask 736256
      %v1584 = vsel %vm1583, %v1578, %v1580
      %v1585 = vsel %vm1583, %v1580, %v1582
      %v1587 = vsel %vm289, %v1576, 0
      %v1589 = vsel %vm293, %v1584, 0
      %v1591 = vsel %vm293, %v1585, 0
      %v1593 = vsel %vm293, %v1582, 0
      %1595 = vmatprep.subr.mxu0 %v1591
      %1596 = vmatpush1.msra.mxu0 %v1589
      %1597 = vmatprep.subr.mxu0 0.0
      %1598 = vmatpush1.msra.mxu0 0.0
      %1599 = vmatprep.subr.mxu0 0.0
      %1600 = vmatpush1.msra.mxu0 0.0
      %1601 = vmatprep.subr.mxu0 0.0
      %1602 = vmatpush1.msra.mxu0 0.0
      %1603 = vmatprep.subr.mxu0 0.0
      %1604 = vmatpush1.msra.mxu0 0.0
      %1605 = vmatprep.subr.mxu0 0.0
      %1606 = vmatpush1.msra.mxu0 0.0
      %1607 = vmatprep.subr.mxu0 0.0
      %1608 = vmatpush1.msra.mxu0 0.0
      %1609 = vmatprep.subr.mxu0 0.0
      %1610 = vmatpush1.msra.mxu0 0.0
      %1611 = vmatprep.subr.mxu0 0.0
      %1612 = vmatpush1.msra.mxu0 0.0
      %1613 = vmatprep.subr.mxu0 0.0
      %1614 = vmatpush1.msra.mxu0 0.0
      %1615 = vmatprep.subr.mxu0 0.0
      %1616 = vmatpush1.msra.mxu0 0.0
      %1617 = vmatprep.subr.mxu0 0.0
      %1618 = vmatpush1.msra.mxu0 0.0
      %1619 = vmatprep.subr.mxu0 0.0
      %1620 = vmatpush1.msra.mxu0 0.0
      %1621 = vmatprep.subr.mxu0 0.0
      %1622 = vmatpush1.msra.mxu0 0.0
      %1623 = vmatprep.subr.mxu0 0.0
      %1624 = vmatpush1.msra.mxu0 0.0
      %1625 = vmatprep.subr.mxu0 0.0
      %1626 = vmatpush1.msra.mxu0 0.0
      %1627 = vmatprep.subr.mxu0 0.0
      %1628 = vmatpush1.msra.mxu0 0.0
      %1629 = vmatprep.subr.mxu0 0.0
      %1630 = vmatpush1.msra.mxu0 0.0
      %1631 = vmatprep.subr.mxu0 0.0
      %1632 = vmatpush1.msra.mxu0 0.0
      %1633 = vmatprep.subr.mxu0 0.0
      %1634 = vmatpush1.msra.mxu0 0.0
      %1635 = vmatprep.subr.mxu0 0.0
      %1636 = vmatpush1.msra.mxu0 0.0
      %1637 = vmatprep.subr.mxu0 0.0
      %1638 = vmatpush1.msra.mxu0 0.0
      %1639 = vmatprep.subr.mxu0 0.0
      %1640 = vmatpush1.msra.mxu0 0.0
      %1641 = vmatprep.subr.mxu0 0.0
      %1642 = vmatpush1.msra.mxu0 0.0
      %1643 = vmatprep.subr.mxu0 0.0
      %1644 = vmatpush1.msra.mxu0 0.0
      %1645 = vmatprep.subr.mxu0 0.0
      %1646 = vmatpush1.msra.mxu0 0.0
      %1647 = vmatprep.subr.mxu0 0.0
      %1648 = vmatpush1.msra.mxu0 0.0
      %1649 = vmatprep.subr.mxu0 0.0
      %1650 = vmatpush1.msra.mxu0 0.0
      %1651 = vmatprep.subr.mxu0 0.0
      %1652 = vmatpush1.msra.mxu0 0.0
      %1653 = vmatprep.subr.mxu0 0.0
      %1654 = vmatpush1.msra.mxu0 0.0
      %1655 = vmatprep.subr.mxu0 0.0
      %1656 = vmatpush1.msra.mxu0 0.0
      %1657 = vmatprep.subr.mxu0 0.0
      %1658 = vmatpush1.msra.mxu0 0.0
      %1659 = vmatprep.mubr.f32.mxu0 0.0
      %1660 = vmatmul.mubr.f32.gmra.mrb[0].mxu0 %v1587
      %v1661 = vpop.f32.mrb[0].mxu0
      %v1662 = vadd.f32 0.0, %v1661
      %v1663 = vpop.f32.mrb[0].mxu0
      %v1664 = vadd.f32 0.0, %v1663
      %1665 = vdwg.mxu0
      %1666 = vmatprep.subr.mxu0 0.0
      %1667 = vmatpush1.msra.mxu0 %v1593
      %1668 = vmatprep.subr.mxu0 0.0
      %1669 = vmatpush1.msra.mxu0 0.0
      %1670 = vmatprep.subr.mxu0 0.0
      %1671 = vmatpush1.msra.mxu0 0.0
      %1672 = vmatprep.subr.mxu0 0.0
      %1673 = vmatpush1.msra.mxu0 0.0
      %1674 = vmatprep.subr.mxu0 0.0
      %1675 = vmatpush1.msra.mxu0 0.0
      %1676 = vmatprep.subr.mxu0 0.0
      %1677 = vmatpush1.msra.mxu0 0.0
      %1678 = vmatprep.subr.mxu0 0.0
      %1679 = vmatpush1.msra.mxu0 0.0
      %1680 = vmatprep.subr.mxu0 0.0
      %1681 = vmatpush1.msra.mxu0 0.0
      %1682 = vmatprep.subr.mxu0 0.0
      %1683 = vmatpush1.msra.mxu0 0.0
      %1684 = vmatprep.subr.mxu0 0.0
      %1685 = vmatpush1.msra.mxu0 0.0
      %1686 = vmatprep.subr.mxu0 0.0
      %1687 = vmatpush1.msra.mxu0 0.0
      %1688 = vmatprep.subr.mxu0 0.0
      %1689 = vmatpush1.msra.mxu0 0.0
      %1690 = vmatprep.subr.mxu0 0.0
      %1691 = vmatpush1.msra.mxu0 0.0
      %1692 = vmatprep.subr.mxu0 0.0
      %1693 = vmatpush1.msra.mxu0 0.0
      %1694 = vmatprep.subr.mxu0 0.0
      %1695 = vmatpush1.msra.mxu0 0.0
      %1696 = vmatprep.subr.mxu0 0.0
      %1697 = vmatpush1.msra.mxu0 0.0
      %1698 = vmatprep.subr.mxu0 0.0
      %1699 = vmatpush1.msra.mxu0 0.0
      %1700 = vmatprep.subr.mxu0 0.0
      %1701 = vmatpush1.msra.mxu0 0.0
      %1702 = vmatprep.subr.mxu0 0.0
      %1703 = vmatpush1.msra.mxu0 0.0
      %1704 = vmatprep.subr.mxu0 0.0
      %1705 = vmatpush1.msra.mxu0 0.0
      %1706 = vmatprep.subr.mxu0 0.0
      %1707 = vmatpush1.msra.mxu0 0.0
      %1708 = vmatprep.subr.mxu0 0.0
      %1709 = vmatpush1.msra.mxu0 0.0
      %1710 = vmatprep.subr.mxu0 0.0
      %1711 = vmatpush1.msra.mxu0 0.0
      %1712 = vmatprep.subr.mxu0 0.0
      %1713 = vmatpush1.msra.mxu0 0.0
      %1714 = vmatprep.subr.mxu0 0.0
      %1715 = vmatpush1.msra.mxu0 0.0
      %1716 = vmatprep.subr.mxu0 0.0
      %1717 = vmatpush1.msra.mxu0 0.0
      %1718 = vmatprep.subr.mxu0 0.0
      %1719 = vmatpush1.msra.mxu0 0.0
      %1720 = vmatprep.subr.mxu0 0.0
      %1721 = vmatpush1.msra.mxu0 0.0
      %1722 = vmatprep.subr.mxu0 0.0
      %1723 = vmatpush1.msra.mxu0 0.0
      %1724 = vmatprep.subr.mxu0 0.0
      %1725 = vmatpush1.msra.mxu0 0.0
      %1726 = vmatprep.subr.mxu0 0.0
      %1727 = vmatpush1.msra.mxu0 0.0
      %1728 = vmatprep.subr.mxu0 0.0
      %1729 = vmatpush1.msra.mxu0 0.0
      %1730 = vmatprep.mubr.f32.mxu0 0.0
      %1731 = vmatmul.mubr.f32.gmra.mrb[0].mxu0 %v1587
      %v1732 = vpop.f32.mrb[0].mxu0
      %v1733 = vadd.f32 0.0, %v1732
      %v1734 = vpop.f32.mrb[0].mxu0
      %1735 = vdwg.mxu0
      %v1736 = vadd.f32 %v1572, %v1662
      %v1737 = vadd.f32 %v1573, %v1664
      %v1738 = vadd.f32 %v1574, %v1733
      %v1739 = vld [vmem:[%s3] sm:$0xff]
      %v1740 = vld [vmem:[%s266] sm:$0xff]
      %v1741 = vld [vmem:[%s266 + $0x8] sm:$0x1]
      %vm1742 = vcmask 72704
      %v1744 = vsel %vm1742, %v1739, 0
      %vm1746 = vcmask 1040384
      %v1748 = vsel %vm1746, %v1741, 0
      %1750 = vmatprep.subr.mxu0 0.0
      %1751 = vmatpush1.msra.mxu0 %v1740
      %1752 = vmatprep.subr.mxu0 0.0
      %1753 = vmatpush1.msra.mxu0 %v1748
      %1754 = vmatprep.subr.mxu0 0.0
      %1755 = vmatpush1.msra.mxu0 0.0
      %1756 = vmatprep.subr.mxu0 0.0
      %1757 = vmatpush1.msra.mxu0 0.0
      %1758 = vmatprep.subr.mxu0 0.0
      %1759 = vmatpush1.msra.mxu0 0.0
      %1760 = vmatprep.subr.mxu0 0.0
      %1761 = vmatpush1.msra.mxu0 0.0
      %1762 = vmatprep.subr.mxu0 0.0
      %1763 = vmatpush1.msra.mxu0 0.0
      %1764 = vmatprep.subr.mxu0 0.0
      %1765 = vmatpush1.msra.mxu0 0.0
      %1766 = vmatprep.subr.mxu0 0.0
      %1767 = vmatpush1.msra.mxu0 0.0
      %1768 = vmatprep.subr.mxu0 0.0
      %1769 = vmatpush1.msra.mxu0 0.0
      %1770 = vmatprep.subr.mxu0 0.0
      %1771 = vmatpush1.msra.mxu0 0.0
      %1772 = vmatprep.subr.mxu0 0.0
      %1773 = vmatpush1.msra.mxu0 0.0
      %1774 = vmatprep.subr.mxu0 0.0
      %1775 = vmatpush1.msra.mxu0 0.0
      %1776 = vmatprep.subr.mxu0 0.0
      %1777 = vmatpush1.msra.mxu0 0.0
      %1778 = vmatprep.subr.mxu0 0.0
      %1779 = vmatpush1.msra.mxu0 0.0
      %1780 = vmatprep.subr.mxu0 0.0
      %1781 = vmatpush1.msra.mxu0 0.0
      %1782 = vmatprep.subr.mxu0 0.0
      %1783 = vmatpush1.msra.mxu0 0.0
      %1784 = vmatprep.subr.mxu0 0.0
      %1785 = vmatpush1.msra.mxu0 0.0
      %1786 = vmatprep.subr.mxu0 0.0
      %1787 = vmatpush1.msra.mxu0 0.0
      %1788 = vmatprep.subr.mxu0 0.0
      %1789 = vmatpush1.msra.mxu0 0.0
      %1790 = vmatprep.subr.mxu0 0.0
      %1791 = vmatpush1.msra.mxu0 0.0
      %1792 = vmatprep.subr.mxu0 0.0
      %1793 = vmatpush1.msra.mxu0 0.0
      %1794 = vmatprep.subr.mxu0 0.0
      %1795 = vmatpush1.msra.mxu0 0.0
      %1796 = vmatprep.subr.mxu0 0.0
      %1797 = vmatpush1.msra.mxu0 0.0
      %1798 = vmatprep.subr.mxu0 0.0
      %1799 = vmatpush1.msra.mxu0 0.0
      %1800 = vmatprep.subr.mxu0 0.0
      %1801 = vmatpush1.msra.mxu0 0.0
      %1802 = vmatprep.subr.mxu0 0.0
      %1803 = vmatpush1.msra.mxu0 0.0
      %1804 = vmatprep.subr.mxu0 0.0
      %1805 = vmatpush1.msra.mxu0 0.0
      %1806 = vmatprep.subr.mxu0 0.0
      %1807 = vmatpush1.msra.mxu0 0.0
      %1808 = vmatprep.subr.mxu0 0.0
      %1809 = vmatpush1.msra.mxu0 0.0
      %1810 = vmatprep.subr.mxu0 0.0
      %1811 = vmatpush1.msra.mxu0 0.0
      %1812 = vmatprep.subr.mxu0 0.0
      %1813 = vmatpush1.msra.mxu0 0.0
      %1814 = vmatprep.mubr.f32.mxu0 0.0
      %1815 = vmatmul.mubr.f32.gmra.mrb[0].mxu0 %v1744
      %v1816 = vpop.f32.mrb[0].mxu0
      %v1817 = vadd.f32 0.0, %v1816
      %v1818 = vpop.f32.mrb[0].mxu0
      %1819 = vdwg.mxu0
      %v1820 = vld [vmem:[%s4] sm:$0xff]
      %v1821 = vld [vmem:[%s4 + $0x8] sm:$0xff]
      %v1822 = vld [vmem:[%s4 + $0x10] sm:$0xff]
      %v1823 = vld [vmem:[%s4 + $0x18] sm:$0xff]
      %v1824 = vld [vmem:[%s4 + $0x20] sm:$0xff]
      %v1825 = vld [vmem:[%s4 + $0x28] sm:$0xff]
      %vm1826 = vcmask 130048
      %v1828 = vsel %vm1826, %v1817, 0
      %1830 = vmatprep.subr.mxu0 %v1821
      %1831 = vmatpush1.msra.mxu0 %v1820
      %1832 = vmatprep.subr.mxu0 %v1824
      %1833 = vmatpush1.msra.mxu0 %v1823
      %1834 = vmatprep.subr.mxu0 0.0
      %1835 = vmatpush1.msra.mxu0 0.0
      %1836 = vmatprep.subr.mxu0 0.0
      %1837 = vmatpush1.msra.mxu0 0.0
      %1838 = vmatprep.subr.mxu0 0.0
      %1839 = vmatpush1.msra.mxu0 0.0
      %1840 = vmatprep.subr.mxu0 0.0
      %1841 = vmatpush1.msra.mxu0 0.0
      %1842 = vmatprep.subr.mxu0 0.0
      %1843 = vmatpush1.msra.mxu0 0.0
      %1844 = vmatprep.subr.mxu0 0.0
      %1845 = vmatpush1.msra.mxu0 0.0
      %1846 = vmatprep.subr.mxu0 0.0
      %1847 = vmatpush1.msra.mxu0 0.0
      %1848 = vmatprep.subr.mxu0 0.0
      %1849 = vmatpush1.msra.mxu0 0.0
      %1850 = vmatprep.subr.mxu0 0.0
      %1851 = vmatpush1.msra.mxu0 0.0
      %1852 = vmatprep.subr.mxu0 0.0
      %1853 = vmatpush1.msra.mxu0 0.0
      %1854 = vmatprep.subr.mxu0 0.0
      %1855 = vmatpush1.msra.mxu0 0.0
      %1856 = vmatprep.subr.mxu0 0.0
      %1857 = vmatpush1.msra.mxu0 0.0
      %1858 = vmatprep.subr.mxu0 0.0
      %1859 = vmatpush1.msra.mxu0 0.0
      %1860 = vmatprep.subr.mxu0 0.0
      %1861 = vmatpush1.msra.mxu0 0.0
      %1862 = vmatprep.subr.mxu0 0.0
      %1863 = vmatpush1.msra.mxu0 0.0
      %1864 = vmatprep.subr.mxu0 0.0
      %1865 = vmatpush1.msra.mxu0 0.0
      %1866 = vmatprep.subr.mxu0 0.0
      %1867 = vmatpush1.msra.mxu0 0.0
      %1868 = vmatprep.subr.mxu0 0.0
      %1869 = vmatpush1.msra.mxu0 0.0
      %1870 = vmatprep.subr.mxu0 0.0
      %1871 = vmatpush1.msra.mxu0 0.0
      %1872 = vmatprep.subr.mxu0 0.0
      %1873 = vmatpush1.msra.mxu0 0.0
      %1874 = vmatprep.subr.mxu0 0.0
      %1875 = vmatpush1.msra.mxu0 0.0
      %1876 = vmatprep.subr.mxu0 0.0
      %1877 = vmatpush1.msra.mxu0 0.0
      %1878 = vmatprep.subr.mxu0 0.0
      %1879 = vmatpush1.msra.mxu0 0.0
      %1880 = vmatprep.subr.mxu0 0.0
      %1881 = vmatpush1.msra.mxu0 0.0
      %1882 = vmatprep.subr.mxu0 0.0
      %1883 = vmatpush1.msra.mxu0 0.0
      %1884 = vmatprep.subr.mxu0 0.0
      %1885 = vmatpush1.msra.mxu0 0.0
      %1886 = vmatprep.subr.mxu0 0.0
      %1887 = vmatpush1.msra.mxu0 0.0
      %1888 = vmatprep.subr.mxu0 0.0
      %1889 = vmatpush1.msra.mxu0 0.0
      %1890 = vmatprep.subr.mxu0 0.0
      %1891 = vmatpush1.msra.mxu0 0.0
      %1892 = vmatprep.subr.mxu0 0.0
      %1893 = vmatpush1.msra.mxu0 0.0
      %1894 = vmatprep.mubr.f32.mxu0 0.0
      %1895 = vmatmul.mubr.f32.gmra.mrb[0].mxu0 %v1828
      %v1896 = vpop.f32.mrb[0].mxu0
      %v1897 = vadd.f32 0.0, %v1896
      %v1898 = vpop.f32.mrb[0].mxu0
      %v1899 = vadd.f32 0.0, %v1898
      %1900 = vdwg.mxu0
      %1901 = vmatprep.subr.mxu0 0.0
      %1902 = vmatpush1.msra.mxu0 %v1822
      %1903 = vmatprep.subr.mxu0 0.0
      %1904 = vmatpush1.msra.mxu0 %v1825
      %1905 = vmatprep.subr.mxu0 0.0
      %1906 = vmatpush1.msra.mxu0 0.0
      %1907 = vmatprep.subr.mxu0 0.0
      %1908 = vmatpush1.msra.mxu0 0.0
      %1909 = vmatprep.subr.mxu0 0.0
      %1910 = vmatpush1.msra.mxu0 0.0
      %1911 = vmatprep.subr.mxu0 0.0
      %1912 = vmatpush1.msra.mxu0 0.0
      %1913 = vmatprep.subr.mxu0 0.0
      %1914 = vmatpush1.msra.mxu0 0.0
      %1915 = vmatprep.subr.mxu0 0.0
      %1916 = vmatpush1.msra.mxu0 0.0
      %1917 = vmatprep.subr.mxu0 0.0
      %1918 = vmatpush1.msra.mxu0 0.0
      %1919 = vmatprep.subr.mxu0 0.0
      %1920 = vmatpush1.msra.mxu0 0.0
      %1921 = vmatprep.subr.mxu0 0.0
      %1922 = vmatpush1.msra.mxu0 0.0
      %1923 = vmatprep.subr.mxu0 0.0
      %1924 = vmatpush1.msra.mxu0 0.0
      %1925 = vmatprep.subr.mxu0 0.0
      %1926 = vmatpush1.msra.mxu0 0.0
      %1927 = vmatprep.subr.mxu0 0.0
      %1928 = vmatpush1.msra.mxu0 0.0
      %1929 = vmatprep.subr.mxu0 0.0
      %1930 = vmatpush1.msra.mxu0 0.0
      %1931 = vmatprep.subr.mxu0 0.0
      %1932 = vmatpush1.msra.mxu0 0.0
      %1933 = vmatprep.subr.mxu0 0.0
      %1934 = vmatpush1.msra.mxu0 0.0
      %1935 = vmatprep.subr.mxu0 0.0
      %1936 = vmatpush1.msra.mxu0 0.0
      %1937 = vmatprep.subr.mxu0 0.0
      %1938 = vmatpush1.msra.mxu0 0.0
      %1939 = vmatprep.subr.mxu0 0.0
      %1940 = vmatpush1.msra.mxu0 0.0
      %1941 = vmatprep.subr.mxu0 0.0
      %1942 = vmatpush1.msra.mxu0 0.0
      %1943 = vmatprep.subr.mxu0 0.0
      %1944 = vmatpush1.msra.mxu0 0.0
      %1945 = vmatprep.subr.mxu0 0.0
      %1946 = vmatpush1.msra.mxu0 0.0
      %1947 = vmatprep.subr.mxu0 0.0
      %1948 = vmatpush1.msra.mxu0 0.0
      %1949 = vmatprep.subr.mxu0 0.0
      %1950 = vmatpush1.msra.mxu0 0.0
      %1951 = vmatprep.subr.mxu0 0.0
      %1952 = vmatpush1.msra.mxu0 0.0
      %1953 = vmatprep.subr.mxu0 0.0
      %1954 = vmatpush1.msra.mxu0 0.0
      %1955 = vmatprep.subr.mxu0 0.0
      %1956 = vmatpush1.msra.mxu0 0.0
      %1957 = vmatprep.subr.mxu0 0.0
      %1958 = vmatpush1.msra.mxu0 0.0
      %1959 = vmatprep.subr.mxu0 0.0
      %1960 = vmatpush1.msra.mxu0 0.0
      %1961 = vmatprep.subr.mxu0 0.0
      %1962 = vmatpush1.msra.mxu0 0.0
      %1963 = vmatprep.subr.mxu0 0.0
      %1964 = vmatpush1.msra.mxu0 0.0
      %1965 = vmatprep.mubr.f32.mxu0 0.0
      %1966 = vmatmul.mubr.f32.gmra.mrb[0].mxu0 %v1828
      %v1967 = vpop.f32.mrb[0].mxu0
      %v1968 = vadd.f32 0.0, %v1967
      %v1969 = vpop.f32.mrb[0].mxu0
      %1970 = vdwg.mxu0
      %v1971 = vadd.f32 %v1736, %v1897
      %v1972 = vadd.f32 %v1737, %v1899
      %v1973 = vadd.f32 %v1738, %v1968
      %v1974 = vld [vmem:[%s5] sm:$0xff]
      %1976 = vset.pattern.permute.xlu0 0
      %1977 = vperm.xlu0 %1976, %v1974
      %v1978 = vpop.permute.xlu0 %1977
      %v1980 = vadd.f32 %v1971, %v1978
      %v1981 = vadd.f32 %v1972, %v1978
      %v1982 = vadd.f32 %v1973, %v1978
      %1983 = vst [vmem:[%s271] sm:$0xff] %v1980
      %1984 = vst [vmem:[%s271 + $0x8] sm:$0xff] %v1981
      %vm1985 = vcmask 556032
      %1986 = vst.msk [vmem:[%s271 + $0x10] sm:$0xff] %vm1985, %v1982
      %p1987 = scmp.lt.s32.totalorder %s17, 1
      %s1988 = scalar_select %p1987, %s17, 1
      %s1989 = smul.addr %s1988, 3
      %s1990 = smul.addr %s1989, 8
      %s1991 = scalar_lea.vmem %s6, %s1990
      // Predicated region
      $region45: #{lora_conv2d_forward.3} parent=43 // pred_check
        %p1992 = pneg %p171
      $region46: #{lora_conv2d_forward.3} parent=43 // pred_check_branch
        %1994 = sbr.rel (%p1992) target = $region48
      $region47: #{lora_conv2d_forward.3} parent=43 // pred_region
        _
      $region48: #{lora_conv2d_forward.3} parent=43 // pred_fallthru
        _
    $region44: #{lora_conv2d_forward.3} parent=5 // pred_fallthru
      _
    %p1995 = scmp.le.s32.totalorder 2, %s12
    // Predicated region
    $region49: #{lora_conv2d_forward.3} parent=5 // pred_check
      %p1996 = pneg %p1995
    $region50: #{lora_conv2d_forward.3} parent=5 // pred_check_branch
      %1998 = sbr.rel (%p1996) target = $region52
    $region51: #{lora_conv2d_forward.3} parent=5 // pred_region
      %s1999 = ssub.s32 %s12, 2
      // Predicated region
      $region53: #{lora_conv2d_forward.3} parent=51 // pred_check
        %p2000 = pneg %p177
      $region54: #{lora_conv2d_forward.3} parent=51 // pred_check_branch
        %2002 = sbr.rel (%p2000) target = $region56
      $region55: #{lora_conv2d_forward.3} parent=51 // pred_region
        %p2003 = scmp.lt.s32.totalorder %s18, 1
        %s2004 = scalar_select %p2003, %s18, 1
        %s2005 = smul.addr %s2004, 3
        %s2006 = smul.addr %s2005, 8
        %s2007 = scalar_lea.vmem %s6, %s2006
      $region56: #{lora_conv2d_forward.3} parent=51 // pred_fallthru
        _
    $region52: #{lora_conv2d_forward.3} parent=5 // pred_fallthru
      _
  $region6: #{lora_conv2d_forward.3} parent=0 // loop_footer
    %s16 = sadd.s32 1, %s12
  $region7: #{lora_conv2d_forward.3} parent=0 // loop_footer_branch
    %11 = sbr.rel target = $region3
  $region8: #{lora_conv2d_forward.3} parent=0 // loop_exit
    _

</llo_original>
